<compile_context>
chip_gen: v7x
topology: tpu7x:2x2x1
jax: 0.10.0
libtpu: 0.0.40
codegen_flags: <defaults>
</compile_context>

<pallas_src>
import functools

import jax
import jax.numpy as jnp
import numpy as np
from jax import lax
from jax.experimental import pallas as pl
from jax.experimental.pallas import tpu as pltpu


# ------------------------------ static layout -------------------------------

def _lenet_dims(B, C, H, W):
    K1, OC1, K2, OC2 = 3, 6, 5, 16
    OH1, OW1 = H - K1 + 1, W - K1 + 1            # conv1 output spatial (14,14)
    PH1, PW1 = OH1 // 2, OW1 // 2                # after pool1          (7,7)
    OH2, OW2 = PH1 - K2 + 1, PW1 - K2 + 1        # conv2 output spatial (3,3)
    assert OH2 // 2 == 1 and OW2 // 2 == 1       # pool2 (2x2, floor) -> 1x1
    N0 = B * H * W                               # conv1 flat-plane width (512)
    PAD0 = N0 + (K1 - 1) * W + (K1 - 1)          # padded input plane     (546)
    P1W = B * PH1 * PW1                          # pooled-1 flat plane     (98)
    P1PAD = P1W + (K2 - 1) * PW1 + (K2 - 1)      # padded pooled plane    (130)
    # max-first pool1: number of base positions that can ever be gathered.
    NSEL = (B - 1) * H * W + 2 * (PH1 - 1) * W + 2 * (PW1 - 1) + 1   # 461
    # Largest shifted read of the max-of-4 is (NSEL-1) + W + 1; it must stay
    # inside the conv1 plane (width N0).  Re-check if B/H/W ever change.
    assert NSEL + W + 1 <= N0, (NSEL, W, N0)
    return dict(B=B, C=C, H=H, W=W, K1=K1, OC1=OC1, K2=K2, OC2=OC2,
                OH1=OH1, OW1=OW1, PH1=PH1, PW1=PW1, OH2=OH2, OW2=OW2,
                N0=N0, PAD0=PAD0, P1W=P1W, P1PAD=P1PAD, NSEL=NSEL)


def _pool1_gather(d):
    """(NSEL, P1PAD) 0/1 matrix.  Column (b*PH1*PW1 + pr*PW1 + pc) selects the
    TOP-LEFT corner position of the 2x2 pool window in the conv1 flat plane
    (the max over the window has already been folded into that position by the
    in-kernel max-first step).  Padding columns (>= P1W) stay all-zero."""
    S = np.zeros((d["NSEL"], d["P1PAD"]), np.float32)
    for b in range(d["B"]):
        for pr in range(d["PH1"]):
            for pc in range(d["PW1"]):
                n = b * d["H"] * d["W"] + (2 * pr) * d["W"] + 2 * pc
                S[n, b * d["PH1"] * d["PW1"] + pr * d["PW1"] + pc] = 1.0
    return S


# ------------------------------ fused kernel --------------------------------

def _lenet_kernel(d, x_ref, w1_ref, b1_ref, sel1_ref, w2_ref, b2_ref,
                  fc1w_ref, fc1b_ref, fc2w_ref, fc2b_ref, fc3w_ref, fc3b_ref,
                  out_ref, xstk, y1s, p1s, pstk, y2s, hs):
    f32 = jnp.float32
    C, W, K1, OC1, K2 = d["C"], d["W"], d["K1"], d["OC1"], d["K2"]
    N0, NSEL, PW1, P1W = d["N0"], d["NSEL"], d["PW1"], d["P1W"]

    # conv1: stack the K1*K1 lane-shifted input slices along sublanes, then a
    # single (OC1, K1*K1*C) @ (K1*K1*C, N0) MXU dot (one push/drain, not 9).
    for t in range(K1 * K1):
        i, j = divmod(t, K1)
        s = i * W + j
        xstk[t * C:(t + 1) * C, :] = x_ref[:, s:s + N0]
    y1s[...] = (jnp.dot(w1_ref[...], xstk[...], preferred_element_type=f32)
                + b1_ref[...])

    # pool1: max FIRST (elementwise max of 4 lane-shifted reads -> VPU/XLU),
    # then ONE 0/1 selector dot gathers the dense pooled plane (zero-padded on
    # the right so conv2's shifted slices stay in bounds).
    m1 = jnp.maximum(
        jnp.maximum(y1s[:, 0:NSEL], y1s[:, 1:NSEL + 1]),
        jnp.maximum(y1s[:, W:NSEL + W], y1s[:, W + 1:NSEL + W + 1]))
    p1s[...] = jnp.dot(m1, sel1_ref[...].astype(f32),
                       preferred_element_type=f32)

    # conv2: same stacking trick -> single (OC2, K2*K2*OC1) @ (150, P1W) dot.
    for t in range(K2 * K2):
        i, j = divmod(t, K2)
        s = i * PW1 + j
        pstk[t * OC1:(t + 1) * OC1, :] = p1s[:, s:s + P1W]
    y2s[...] = (jnp.dot(w2_ref[...], pstk[...], preferred_element_type=f32)
                + b2_ref[...])

    # pool2 (2x2, floor, on the 3x3 conv2 map -> 1x1) + flatten, kept
    # transposed: features on sublanes, batch on lanes (OC2, B).
    win = d["PH1"] * d["PW1"]
    for b in range(d["B"]):
        n = b * win
        hs[:, b:b + 1] = jnp.maximum(
            jnp.maximum(y2s[:, n:n + 1], y2s[:, n + 1:n + 2]),
            jnp.maximum(y2s[:, n + PW1:n + PW1 + 1],
                        y2s[:, n + PW1 + 1:n + PW1 + 2]))

    # fc1 -> fc2 -> fc3 (PyTorch (out, in) weight layout used directly).
    h = jnp.dot(fc1w_ref[...], hs[...], preferred_element_type=f32) + fc1b_ref[...]
    h = jnp.dot(fc2w_ref[...], h, preferred_element_type=f32) + fc2b_ref[...]
    out_ref[...] = (jnp.dot(fc3w_ref[...], h, preferred_element_type=f32)
                    + fc3b_ref[...])


# ----------------------------- forward wrapper -------------------------------

@jax.jit
def lenet_forward(x, params):
    B, C, H, W = x.shape
    d = _lenet_dims(B, C, H, W)
    num_classes = params["fc3_w"].shape[0]

    # Tiny host-side layout glue (no im2col; total inputs < ~0.2 MB).
    x_flat = x.transpose(1, 0, 2, 3).reshape(C, d["N0"])              # (C, B*H*W)
    x_flat = jnp.pad(x_flat, ((0, 0), (0, d["PAD0"] - d["N0"])))      # finite pad
    w1_stk = params["w1"].transpose(0, 2, 3, 1).reshape(d["OC1"], d["K1"] ** 2 * C)
    w2_stk = params["w2"].transpose(0, 2, 3, 1).reshape(d["OC2"], d["K2"] ** 2 * d["OC1"])
    b1 = params["b1"].reshape(d["OC1"], 1)
    b2 = params["b2"].reshape(d["OC2"], 1)
    fc1_b = params["fc1_b"].reshape(-1, 1)
    fc2_b = params["fc2_b"].reshape(-1, 1)
    fc3_b = params["fc3_b"].reshape(-1, 1)
    # 0/1 gather matrix: exact in bfloat16 (halves its HBM DMA); upcast in-kernel.
    sel1 = jnp.asarray(_pool1_gather(d), dtype=jnp.bfloat16)

    inputs = (x_flat, w1_stk, b1, sel1, w2_stk, b2,
              params["fc1_w"], fc1_b, params["fc2_w"], fc2_b,
              params["fc3_w"], fc3_b)

    out_t = pl.pallas_call(
        functools.partial(_lenet_kernel, d),
        out_shape=jax.ShapeDtypeStruct((num_classes, B), jnp.float32),
        # No grid: single invocation, whole arrays resident in VMEM (no
        # double-buffered 1-step pipeline, no pointless prologue/epilogue).
        in_specs=[pl.BlockSpec(memory_space=pltpu.MemorySpace.VMEM)
                  for _ in inputs],
        out_specs=pl.BlockSpec(memory_space=pltpu.MemorySpace.VMEM),
        scratch_shapes=[
            pltpu.VMEM((d["K1"] ** 2 * C, d["N0"]), jnp.float32),         # xstk
            pltpu.VMEM((d["OC1"], d["N0"]), jnp.float32),                 # conv1 plane
            pltpu.VMEM((d["OC1"], d["P1PAD"]), jnp.float32),              # pooled1 plane
            pltpu.VMEM((d["K2"] ** 2 * d["OC1"], d["P1W"]), jnp.float32), # pstk
            pltpu.VMEM((d["OC2"], d["P1W"]), jnp.float32),                # conv2 plane
            pltpu.VMEM((d["OC2"], B), jnp.float32),                       # flat feats
        ],
    )(*inputs)
    # NOTE(v7x): if batch is ever scaled up, add a "parallel" grid axis over the
    # flat-plane lane dimension (>=512-lane tiles) so both TensorCores are used.
    return out_t.T                                                     # (B, classes)


# ------------------------------- reference -----------------------------------

def lenet_reference(x, params):
    hp = lax.Precision.HIGHEST

    def conv(x, w, b):
        y = lax.conv_general_dilated(x, w, (1, 1), "VALID",
                                     dimension_numbers=("NCHW", "OIHW", "NCHW"),
                                     precision=hp)
        return y + b.reshape(1, -1, 1, 1)

    def pool(x):
        return lax.reduce_window(x, -jnp.inf, lax.max,
                                 (1, 1, 2, 2), (1, 1, 2, 2), "VALID")

    y = pool(conv(x, params["w1"], params["b1"]))
    y = pool(conv(y, params["w2"], params["b2"]))
    y = y.reshape(y.shape[0], -1)
    y = jnp.dot(y, params["fc1_w"].T, precision=hp) + params["fc1_b"]
    y = jnp.dot(y, params["fc2_w"].T, precision=hp) + params["fc2_b"]
    y = jnp.dot(y, params["fc3_w"].T, precision=hp) + params["fc3_b"]
    return y


# --------------------------------- main ---------------------------------------

def init_params(key, deep, num_classes, in_features):
    def uni(k, shape, fan_in):
        bound = 1.0 / np.sqrt(fan_in)
        return jax.random.uniform(k, shape, jnp.float32, -bound, bound)

    ks = jax.random.split(key, 10)
    return {
        "w1": uni(ks[0], (6, deep, 3, 3), deep * 9),
        "b1": uni(ks[1], (6,), deep * 9),
        "w2": uni(ks[2], (16, 6, 5, 5), 6 * 25),
        "b2": uni(ks[3], (16,), 6 * 25),
        "fc1_w": uni(ks[4], (120, in_features), in_features),
        "fc1_b": uni(ks[5], (120,), in_features),
        "fc2_w": uni(ks[6], (84, 120), 120),
        "fc2_b": uni(ks[7], (84,), 120),
        "fc3_w": uni(ks[8], (num_classes, 84), 84),
        "fc3_b": uni(ks[9], (num_classes,), 84),
    }


if __name__ == "__main__":
    # LeNet(shape=(16, 16, 4), num_classes=10), batch=2 -> input NCHW (2, 4, 16, 16)
    width, height, deep = 16, 16, 4
    num_classes = 10
    batch = 2
    in_features = (int(((width - 2) / 2 - 4) / 2)
                   * int(((height - 2) / 2 - 4) / 2) * 16)

    key = jax.random.PRNGKey(0)
    k_x, k_p = jax.random.split(key)
    x = jax.random.normal(k_x, (batch, deep, height, width), jnp.float32)
    params = init_params(k_p, deep, num_classes, in_features)

    out = jax.block_until_ready(lenet_forward(x, params))
    assert out.shape == (batch, num_classes), out.shape

    ref = jax.block_until_ready(lenet_reference(x, params))
    np.testing.assert_allclose(np.asarray(out), np.asarray(ref),
                               rtol=1e-4, atol=1e-4)

    print("KERNEL_OK")
</pallas_src>

<mosaic_0001>
module attributes {stable_mosaic.version = 11 : i64} {
  func.func @_lenet_kernel(%arg0: memref<4x546xf32, #tpu.memory_space<vmem>>, %arg1: memref<6x36xf32, #tpu.memory_space<vmem>>, %arg2: memref<6x1xf32, #tpu.memory_space<vmem>>, %arg3: memref<461x130xbf16, #tpu.memory_space<vmem>>, %arg4: memref<16x150xf32, #tpu.memory_space<vmem>>, %arg5: memref<16x1xf32, #tpu.memory_space<vmem>>, %arg6: memref<120x16xf32, #tpu.memory_space<vmem>>, %arg7: memref<120x1xf32, #tpu.memory_space<vmem>>, %arg8: memref<84x120xf32, #tpu.memory_space<vmem>>, %arg9: memref<84x1xf32, #tpu.memory_space<vmem>>, %arg10: memref<10x84xf32, #tpu.memory_space<vmem>>, %arg11: memref<10x1xf32, #tpu.memory_space<vmem>>, %arg12: memref<10x2xf32, #tpu.memory_space<vmem>>, %arg13: memref<36x512xf32, #tpu.memory_space<vmem>>, %arg14: memref<6x512xf32, #tpu.memory_space<vmem>>, %arg15: memref<6x130xf32, #tpu.memory_space<vmem>>, %arg16: memref<150x98xf32, #tpu.memory_space<vmem>>, %arg17: memref<16x98xf32, #tpu.memory_space<vmem>>, %arg18: memref<16x2xf32, #tpu.memory_space<vmem>>) attributes {dimension_semantics = [], scalar_prefetch = 0 : i64, scratch_operands = 6 : i64, tpu.core_type = #tpu.core_type<tc>} {
    %c0 = arith.constant 0 : index
    %c0_0 = arith.constant 0 : index
    %0 = vector.load %arg0[%c0, %c0_0] : memref<4x546xf32, #tpu.memory_space<vmem>>, vector<4x512xf32>
    %c0_1 = arith.constant 0 : index
    %c0_2 = arith.constant 0 : index
    %1 = vector.load %arg13[%c0_1, %c0_2] : memref<36x512xf32, #tpu.memory_space<vmem>>, vector<4x512xf32>
    tpu.vector_store %arg13[%c0_1, %c0_2], %0 {strides = array<i32>} : memref<36x512xf32, #tpu.memory_space<vmem>>, vector<4x512xf32>,
    %c0_3 = arith.constant 0 : index
    %c1 = arith.constant 1 : index
    %2 = vector.load %arg0[%c0_3, %c1] : memref<4x546xf32, #tpu.memory_space<vmem>>, vector<4x512xf32>
    %c4 = arith.constant 4 : index
    %c0_4 = arith.constant 0 : index
    %3 = vector.load %arg13[%c4, %c0_4] : memref<36x512xf32, #tpu.memory_space<vmem>>, vector<4x512xf32>
    tpu.vector_store %arg13[%c4, %c0_4], %2 {strides = array<i32>} : memref<36x512xf32, #tpu.memory_space<vmem>>, vector<4x512xf32>,
    %c0_5 = arith.constant 0 : index
    %c2 = arith.constant 2 : index
    %4 = vector.load %arg0[%c0_5, %c2] : memref<4x546xf32, #tpu.memory_space<vmem>>, vector<4x512xf32>
    %c8 = arith.constant 8 : index
    %c0_6 = arith.constant 0 : index
    %5 = vector.load %arg13[%c8, %c0_6] : memref<36x512xf32, #tpu.memory_space<vmem>>, vector<4x512xf32>
    tpu.vector_store %arg13[%c8, %c0_6], %4 {strides = array<i32>} : memref<36x512xf32, #tpu.memory_space<vmem>>, vector<4x512xf32>,
    %c0_7 = arith.constant 0 : index
    %c16 = arith.constant 16 : index
    %6 = vector.load %arg0[%c0_7, %c16] : memref<4x546xf32, #tpu.memory_space<vmem>>, vector<4x512xf32>
    %c12 = arith.constant 12 : index
    %c0_8 = arith.constant 0 : index
    %7 = vector.load %arg13[%c12, %c0_8] : memref<36x512xf32, #tpu.memory_space<vmem>>, vector<4x512xf32>
    tpu.vector_store %arg13[%c12, %c0_8], %6 {strides = array<i32>} : memref<36x512xf32, #tpu.memory_space<vmem>>, vector<4x512xf32>,
    %c0_9 = arith.constant 0 : index
    %c17 = arith.constant 17 : index
    %8 = vector.load %arg0[%c0_9, %c17] : memref<4x546xf32, #tpu.memory_space<vmem>>, vector<4x512xf32>
    %c16_10 = arith.constant 16 : index
    %c0_11 = arith.constant 0 : index
    %9 = vector.load %arg13[%c16_10, %c0_11] : memref<36x512xf32, #tpu.memory_space<vmem>>, vector<4x512xf32>
    tpu.vector_store %arg13[%c16_10, %c0_11], %8 {strides = array<i32>} : memref<36x512xf32, #tpu.memory_space<vmem>>, vector<4x512xf32>,
    %c0_12 = arith.constant 0 : index
    %c18 = arith.constant 18 : index
    %10 = vector.load %arg0[%c0_12, %c18] : memref<4x546xf32, #tpu.memory_space<vmem>>, vector<4x512xf32>
    %c20 = arith.constant 20 : index
    %c0_13 = arith.constant 0 : index
    %11 = vector.load %arg13[%c20, %c0_13] : memref<36x512xf32, #tpu.memory_space<vmem>>, vector<4x512xf32>
    tpu.vector_store %arg13[%c20, %c0_13], %10 {strides = array<i32>} : memref<36x512xf32, #tpu.memory_space<vmem>>, vector<4x512xf32>,
    %c0_14 = arith.constant 0 : index
    %c32 = arith.constant 32 : index
    %12 = vector.load %arg0[%c0_14, %c32] : memref<4x546xf32, #tpu.memory_space<vmem>>, vector<4x512xf32>
    %c24 = arith.constant 24 : index
    %c0_15 = arith.constant 0 : index
    %13 = vector.load %arg13[%c24, %c0_15] : memref<36x512xf32, #tpu.memory_space<vmem>>, vector<4x512xf32>
    tpu.vector_store %arg13[%c24, %c0_15], %12 {strides = array<i32>} : memref<36x512xf32, #tpu.memory_space<vmem>>, vector<4x512xf32>,
    %c0_16 = arith.constant 0 : index
    %c33 = arith.constant 33 : index
    %14 = vector.load %arg0[%c0_16, %c33] : memref<4x546xf32, #tpu.memory_space<vmem>>, vector<4x512xf32>
    %c28 = arith.constant 28 : index
    %c0_17 = arith.constant 0 : index
    %15 = vector.load %arg13[%c28, %c0_17] : memref<36x512xf32, #tpu.memory_space<vmem>>, vector<4x512xf32>
    tpu.vector_store %arg13[%c28, %c0_17], %14 {strides = array<i32>} : memref<36x512xf32, #tpu.memory_space<vmem>>, vector<4x512xf32>,
    %c0_18 = arith.constant 0 : index
    %c34 = arith.constant 34 : index
    %16 = vector.load %arg0[%c0_18, %c34] : memref<4x546xf32, #tpu.memory_space<vmem>>, vector<4x512xf32>
    %c32_19 = arith.constant 32 : index
    %c0_20 = arith.constant 0 : index
    %17 = vector.load %arg13[%c32_19, %c0_20] : memref<36x512xf32, #tpu.memory_space<vmem>>, vector<4x512xf32>
    tpu.vector_store %arg13[%c32_19, %c0_20], %16 {strides = array<i32>} : memref<36x512xf32, #tpu.memory_space<vmem>>, vector<4x512xf32>,
    %c0_21 = arith.constant 0 : index
    %c0_22 = arith.constant 0 : index
    %18 = vector.load %arg1[%c0_21, %c0_22] : memref<6x36xf32, #tpu.memory_space<vmem>>, vector<6x36xf32>
    %c0_23 = arith.constant 0 : index
    %c0_24 = arith.constant 0 : index
    %19 = vector.load %arg13[%c0_23, %c0_24] : memref<36x512xf32, #tpu.memory_space<vmem>>, vector<36x512xf32>
    %cst = arith.constant dense<0.000000e+00> : vector<6x512xf32>
    %20 = tpu.matmul %18, %19, %cst {dimension_numbers = #tpu.dot_dimension_numbers<[1], [0], [0], [1], [0, 0, 1, 1], [], []>} : vector<6x36xf32>, vector<36x512xf32>, vector<6x512xf32> -> vector<6x512xf32>
    %c0_25 = arith.constant 0 : index
    %c0_26 = arith.constant 0 : index
    %21 = vector.load %arg2[%c0_25, %c0_26] : memref<6x1xf32, #tpu.memory_space<vmem>>, vector<6x1xf32>
    %22 = vector.broadcast %21 : vector<6x1xf32> to vector<6x512xf32>
    %23 = arith.addf %20, %22 : vector<6x512xf32>
    %c0_27 = arith.constant 0 : index
    %c0_28 = arith.constant 0 : index
    %24 = vector.load %arg14[%c0_27, %c0_28] : memref<6x512xf32, #tpu.memory_space<vmem>>, vector<6x512xf32>
    tpu.vector_store %arg14[%c0_27, %c0_28], %23 {strides = array<i32>} : memref<6x512xf32, #tpu.memory_space<vmem>>, vector<6x512xf32>,
    %c0_29 = arith.constant 0 : index
    %c0_30 = arith.constant 0 : index
    %25 = vector.load %arg14[%c0_29, %c0_30] : memref<6x512xf32, #tpu.memory_space<vmem>>, vector<6x461xf32>
    %c0_31 = arith.constant 0 : index
    %c1_32 = arith.constant 1 : index
    %26 = vector.load %arg14[%c0_31, %c1_32] : memref<6x512xf32, #tpu.memory_space<vmem>>, vector<6x461xf32>
    %27 = arith.maximumf %25, %26 : vector<6x461xf32>
    %c0_33 = arith.constant 0 : index
    %c16_34 = arith.constant 16 : index
    %28 = vector.load %arg14[%c0_33, %c16_34] : memref<6x512xf32, #tpu.memory_space<vmem>>, vector<6x461xf32>
    %c0_35 = arith.constant 0 : index
    %c17_36 = arith.constant 17 : index
    %29 = vector.load %arg14[%c0_35, %c17_36] : memref<6x512xf32, #tpu.memory_space<vmem>>, vector<6x461xf32>
    %30 = arith.maximumf %28, %29 : vector<6x461xf32>
    %31 = arith.maximumf %27, %30 : vector<6x461xf32>
    %c0_37 = arith.constant 0 : index
    %c0_38 = arith.constant 0 : index
    %32 = vector.load %arg3[%c0_37, %c0_38] : memref<461x130xbf16, #tpu.memory_space<vmem>>, vector<461x130xbf16>
    %33 = arith.extf %32 : vector<461x130xbf16> to vector<461x130xf32>
    %cst_39 = arith.constant dense<0.000000e+00> : vector<6x130xf32>
    %34 = tpu.matmul %31, %33, %cst_39 {dimension_numbers = #tpu.dot_dimension_numbers<[1], [0], [0], [1], [0, 0, 1, 1], [], []>} : vector<6x461xf32>, vector<461x130xf32>, vector<6x130xf32> -> vector<6x130xf32>
    %c0_40 = arith.constant 0 : index
    %c0_41 = arith.constant 0 : index
    %35 = vector.load %arg15[%c0_40, %c0_41] : memref<6x130xf32, #tpu.memory_space<vmem>>, vector<6x130xf32>
    tpu.vector_store %arg15[%c0_40, %c0_41], %34 {strides = array<i32>} : memref<6x130xf32, #tpu.memory_space<vmem>>, vector<6x130xf32>,
    %c0_42 = arith.constant 0 : index
    %c0_43 = arith.constant 0 : index
    %36 = vector.load %arg15[%c0_42, %c0_43] : memref<6x130xf32, #tpu.memory_space<vmem>>, vector<6x98xf32>
    %c0_44 = arith.constant 0 : index
    %c0_45 = arith.constant 0 : index
    %37 = vector.load %arg16[%c0_44, %c0_45] : memref<150x98xf32, #tpu.memory_space<vmem>>, vector<6x98xf32>
    tpu.vector_store %arg16[%c0_44, %c0_45], %36 {strides = array<i32>} : memref<150x98xf32, #tpu.memory_space<vmem>>, vector<6x98xf32>,
    %c0_46 = arith.constant 0 : index
    %c1_47 = arith.constant 1 : index
    %38 = vector.load %arg15[%c0_46, %c1_47] : memref<6x130xf32, #tpu.memory_space<vmem>>, vector<6x98xf32>
    %c6 = arith.constant 6 : index
    %c0_48 = arith.constant 0 : index
    %39 = vector.load %arg16[%c6, %c0_48] : memref<150x98xf32, #tpu.memory_space<vmem>>, vector<6x98xf32>
    tpu.vector_store %arg16[%c6, %c0_48], %38 {strides = array<i32>} : memref<150x98xf32, #tpu.memory_space<vmem>>, vector<6x98xf32>,
    %c0_49 = arith.constant 0 : index
    %c2_50 = arith.constant 2 : index
    %40 = vector.load %arg15[%c0_49, %c2_50] : memref<6x130xf32, #tpu.memory_space<vmem>>, vector<6x98xf32>
    %c12_51 = arith.constant 12 : index
    %c0_52 = arith.constant 0 : index
    %41 = vector.load %arg16[%c12_51, %c0_52] : memref<150x98xf32, #tpu.memory_space<vmem>>, vector<6x98xf32>
    tpu.vector_store %arg16[%c12_51, %c0_52], %40 {strides = array<i32>} : memref<150x98xf32, #tpu.memory_space<vmem>>, vector<6x98xf32>,
    %c0_53 = arith.constant 0 : index
    %c3 = arith.constant 3 : index
    %42 = vector.load %arg15[%c0_53, %c3] : memref<6x130xf32, #tpu.memory_space<vmem>>, vector<6x98xf32>
    %c18_54 = arith.constant 18 : index
    %c0_55 = arith.constant 0 : index
    %43 = vector.load %arg16[%c18_54, %c0_55] : memref<150x98xf32, #tpu.memory_space<vmem>>, vector<6x98xf32>
    tpu.vector_store %arg16[%c18_54, %c0_55], %42 {strides = array<i32>} : memref<150x98xf32, #tpu.memory_space<vmem>>, vector<6x98xf32>,
    %c0_56 = arith.constant 0 : index
    %c4_57 = arith.constant 4 : index
    %44 = vector.load %arg15[%c0_56, %c4_57] : memref<6x130xf32, #tpu.memory_space<vmem>>, vector<6x98xf32>
    %c24_58 = arith.constant 24 : index
    %c0_59 = arith.constant 0 : index
    %45 = vector.load %arg16[%c24_58, %c0_59] : memref<150x98xf32, #tpu.memory_space<vmem>>, vector<6x98xf32>
    tpu.vector_store %arg16[%c24_58, %c0_59], %44 {strides = array<i32>} : memref<150x98xf32, #tpu.memory_space<vmem>>, vector<6x98xf32>,
    %c0_60 = arith.constant 0 : index
    %c7 = arith.constant 7 : index
    %46 = vector.load %arg15[%c0_60, %c7] : memref<6x130xf32, #tpu.memory_space<vmem>>, vector<6x98xf32>
    %c30 = arith.constant 30 : index
    %c0_61 = arith.constant 0 : index
    %47 = vector.load %arg16[%c30, %c0_61] : memref<150x98xf32, #tpu.memory_space<vmem>>, vector<6x98xf32>
    tpu.vector_store %arg16[%c30, %c0_61], %46 {strides = array<i32>} : memref<150x98xf32, #tpu.memory_space<vmem>>, vector<6x98xf32>,
    %c0_62 = arith.constant 0 : index
    %c8_63 = arith.constant 8 : index
    %48 = vector.load %arg15[%c0_62, %c8_63] : memref<6x130xf32, #tpu.memory_space<vmem>>, vector<6x98xf32>
    %c36 = arith.constant 36 : index
    %c0_64 = arith.constant 0 : index
    %49 = vector.load %arg16[%c36, %c0_64] : memref<150x98xf32, #tpu.memory_space<vmem>>, vector<6x98xf32>
    tpu.vector_store %arg16[%c36, %c0_64], %48 {strides = array<i32>} : memref<150x98xf32, #tpu.memory_space<vmem>>, vector<6x98xf32>,
    %c0_65 = arith.constant 0 : index
    %c9 = arith.constant 9 : index
    %50 = vector.load %arg15[%c0_65, %c9] : memref<6x130xf32, #tpu.memory_space<vmem>>, vector<6x98xf32>
    %c42 = arith.constant 42 : index
    %c0_66 = arith.constant 0 : index
    %51 = vector.load %arg16[%c42, %c0_66] : memref<150x98xf32, #tpu.memory_space<vmem>>, vector<6x98xf32>
    tpu.vector_store %arg16[%c42, %c0_66], %50 {strides = array<i32>} : memref<150x98xf32, #tpu.memory_space<vmem>>, vector<6x98xf32>,
    %c0_67 = arith.constant 0 : index
    %c10 = arith.constant 10 : index
    %52 = vector.load %arg15[%c0_67, %c10] : memref<6x130xf32, #tpu.memory_space<vmem>>, vector<6x98xf32>
    %c48 = arith.constant 48 : index
    %c0_68 = arith.constant 0 : index
    %53 = vector.load %arg16[%c48, %c0_68] : memref<150x98xf32, #tpu.memory_space<vmem>>, vector<6x98xf32>
    tpu.vector_store %arg16[%c48, %c0_68], %52 {strides = array<i32>} : memref<150x98xf32, #tpu.memory_space<vmem>>, vector<6x98xf32>,
    %c0_69 = arith.constant 0 : index
    %c11 = arith.constant 11 : index
    %54 = vector.load %arg15[%c0_69, %c11] : memref<6x130xf32, #tpu.memory_space<vmem>>, vector<6x98xf32>
    %c54 = arith.constant 54 : index
    %c0_70 = arith.constant 0 : index
    %55 = vector.load %arg16[%c54, %c0_70] : memref<150x98xf32, #tpu.memory_space<vmem>>, vector<6x98xf32>
    tpu.vector_store %arg16[%c54, %c0_70], %54 {strides = array<i32>} : memref<150x98xf32, #tpu.memory_space<vmem>>, vector<6x98xf32>,
    %c0_71 = arith.constant 0 : index
    %c14 = arith.constant 14 : index
    %56 = vector.load %arg15[%c0_71, %c14] : memref<6x130xf32, #tpu.memory_space<vmem>>, vector<6x98xf32>
    %c60 = arith.constant 60 : index
    %c0_72 = arith.constant 0 : index
    %57 = vector.load %arg16[%c60, %c0_72] : memref<150x98xf32, #tpu.memory_space<vmem>>, vector<6x98xf32>
    tpu.vector_store %arg16[%c60, %c0_72], %56 {strides = array<i32>} : memref<150x98xf32, #tpu.memory_space<vmem>>, vector<6x98xf32>,
    %c0_73 = arith.constant 0 : index
    %c15 = arith.constant 15 : index
    %58 = vector.load %arg15[%c0_73, %c15] : memref<6x130xf32, #tpu.memory_space<vmem>>, vector<6x98xf32>
    %c66 = arith.constant 66 : index
    %c0_74 = arith.constant 0 : index
    %59 = vector.load %arg16[%c66, %c0_74] : memref<150x98xf32, #tpu.memory_space<vmem>>, vector<6x98xf32>
    tpu.vector_store %arg16[%c66, %c0_74], %58 {strides = array<i32>} : memref<150x98xf32, #tpu.memory_space<vmem>>, vector<6x98xf32>,
    %c0_75 = arith.constant 0 : index
    %c16_76 = arith.constant 16 : index
    %60 = vector.load %arg15[%c0_75, %c16_76] : memref<6x130xf32, #tpu.memory_space<vmem>>, vector<6x98xf32>
    %c72 = arith.constant 72 : index
    %c0_77 = arith.constant 0 : index
    %61 = vector.load %arg16[%c72, %c0_77] : memref<150x98xf32, #tpu.memory_space<vmem>>, vector<6x98xf32>
    tpu.vector_store %arg16[%c72, %c0_77], %60 {strides = array<i32>} : memref<150x98xf32, #tpu.memory_space<vmem>>, vector<6x98xf32>,
    %c0_78 = arith.constant 0 : index
    %c17_79 = arith.constant 17 : index
    %62 = vector.load %arg15[%c0_78, %c17_79] : memref<6x130xf32, #tpu.memory_space<vmem>>, vector<6x98xf32>
    %c78 = arith.constant 78 : index
    %c0_80 = arith.constant 0 : index
    %63 = vector.load %arg16[%c78, %c0_80] : memref<150x98xf32, #tpu.memory_space<vmem>>, vector<6x98xf32>
    tpu.vector_store %arg16[%c78, %c0_80], %62 {strides = array<i32>} : memref<150x98xf32, #tpu.memory_space<vmem>>, vector<6x98xf32>,
    %c0_81 = arith.constant 0 : index
    %c18_82 = arith.constant 18 : index
    %64 = vector.load %arg15[%c0_81, %c18_82] : memref<6x130xf32, #tpu.memory_space<vmem>>, vector<6x98xf32>
    %c84 = arith.constant 84 : index
    %c0_83 = arith.constant 0 : index
    %65 = vector.load %arg16[%c84, %c0_83] : memref<150x98xf32, #tpu.memory_space<vmem>>, vector<6x98xf32>
    tpu.vector_store %arg16[%c84, %c0_83], %64 {strides = array<i32>} : memref<150x98xf32, #tpu.memory_space<vmem>>, vector<6x98xf32>,
    %c0_84 = arith.constant 0 : index
    %c21 = arith.constant 21 : index
    %66 = vector.load %arg15[%c0_84, %c21] : memref<6x130xf32, #tpu.memory_space<vmem>>, vector<6x98xf32>
    %c90 = arith.constant 90 : index
    %c0_85 = arith.constant 0 : index
    %67 = vector.load %arg16[%c90, %c0_85] : memref<150x98xf32, #tpu.memory_space<vmem>>, vector<6x98xf32>
    tpu.vector_store %arg16[%c90, %c0_85], %66 {strides = array<i32>} : memref<150x98xf32, #tpu.memory_space<vmem>>, vector<6x98xf32>,
    %c0_86 = arith.constant 0 : index
    %c22 = arith.constant 22 : index
    %68 = vector.load %arg15[%c0_86, %c22] : memref<6x130xf32, #tpu.memory_space<vmem>>, vector<6x98xf32>
    %c96 = arith.constant 96 : index
    %c0_87 = arith.constant 0 : index
    %69 = vector.load %arg16[%c96, %c0_87] : memref<150x98xf32, #tpu.memory_space<vmem>>, vector<6x98xf32>
    tpu.vector_store %arg16[%c96, %c0_87], %68 {strides = array<i32>} : memref<150x98xf32, #tpu.memory_space<vmem>>, vector<6x98xf32>,
    %c0_88 = arith.constant 0 : index
    %c23 = arith.constant 23 : index
    %70 = vector.load %arg15[%c0_88, %c23] : memref<6x130xf32, #tpu.memory_space<vmem>>, vector<6x98xf32>
    %c102 = arith.constant 102 : index
    %c0_89 = arith.constant 0 : index
    %71 = vector.load %arg16[%c102, %c0_89] : memref<150x98xf32, #tpu.memory_space<vmem>>, vector<6x98xf32>
    tpu.vector_store %arg16[%c102, %c0_89], %70 {strides = array<i32>} : memref<150x98xf32, #tpu.memory_space<vmem>>, vector<6x98xf32>,
    %c0_90 = arith.constant 0 : index
    %c24_91 = arith.constant 24 : index
    %72 = vector.load %arg15[%c0_90, %c24_91] : memref<6x130xf32, #tpu.memory_space<vmem>>, vector<6x98xf32>
    %c108 = arith.constant 108 : index
    %c0_92 = arith.constant 0 : index
    %73 = vector.load %arg16[%c108, %c0_92] : memref<150x98xf32, #tpu.memory_space<vmem>>, vector<6x98xf32>
    tpu.vector_store %arg16[%c108, %c0_92], %72 {strides = array<i32>} : memref<150x98xf32, #tpu.memory_space<vmem>>, vector<6x98xf32>,
    %c0_93 = arith.constant 0 : index
    %c25 = arith.constant 25 : index
    %74 = vector.load %arg15[%c0_93, %c25] : memref<6x130xf32, #tpu.memory_space<vmem>>, vector<6x98xf32>
    %c114 = arith.constant 114 : index
    %c0_94 = arith.constant 0 : index
    %75 = vector.load %arg16[%c114, %c0_94] : memref<150x98xf32, #tpu.memory_space<vmem>>, vector<6x98xf32>
    tpu.vector_store %arg16[%c114, %c0_94], %74 {strides = array<i32>} : memref<150x98xf32, #tpu.memory_space<vmem>>, vector<6x98xf32>,
    %c0_95 = arith.constant 0 : index
    %c28_96 = arith.constant 28 : index
    %76 = vector.load %arg15[%c0_95, %c28_96] : memref<6x130xf32, #tpu.memory_space<vmem>>, vector<6x98xf32>
    %c120 = arith.constant 120 : index
    %c0_97 = arith.constant 0 : index
    %77 = vector.load %arg16[%c120, %c0_97] : memref<150x98xf32, #tpu.memory_space<vmem>>, vector<6x98xf32>
    tpu.vector_store %arg16[%c120, %c0_97], %76 {strides = array<i32>} : memref<150x98xf32, #tpu.memory_space<vmem>>, vector<6x98xf32>,
    %c0_98 = arith.constant 0 : index
    %c29 = arith.constant 29 : index
    %78 = vector.load %arg15[%c0_98, %c29] : memref<6x130xf32, #tpu.memory_space<vmem>>, vector<6x98xf32>
    %c126 = arith.constant 126 : index
    %c0_99 = arith.constant 0 : index
    %79 = vector.load %arg16[%c126, %c0_99] : memref<150x98xf32, #tpu.memory_space<vmem>>, vector<6x98xf32>
    tpu.vector_store %arg16[%c126, %c0_99], %78 {strides = array<i32>} : memref<150x98xf32, #tpu.memory_space<vmem>>, vector<6x98xf32>,
    %c0_100 = arith.constant 0 : index
    %c30_101 = arith.constant 30 : index
    %80 = vector.load %arg15[%c0_100, %c30_101] : memref<6x130xf32, #tpu.memory_space<vmem>>, vector<6x98xf32>
    %c132 = arith.constant 132 : index
    %c0_102 = arith.constant 0 : index
    %81 = vector.load %arg16[%c132, %c0_102] : memref<150x98xf32, #tpu.memory_space<vmem>>, vector<6x98xf32>
    tpu.vector_store %arg16[%c132, %c0_102], %80 {strides = array<i32>} : memref<150x98xf32, #tpu.memory_space<vmem>>, vector<6x98xf32>,
    %c0_103 = arith.constant 0 : index
    %c31 = arith.constant 31 : index
    %82 = vector.load %arg15[%c0_103, %c31] : memref<6x130xf32, #tpu.memory_space<vmem>>, vector<6x98xf32>
    %c138 = arith.constant 138 : index
    %c0_104 = arith.constant 0 : index
    %83 = vector.load %arg16[%c138, %c0_104] : memref<150x98xf32, #tpu.memory_space<vmem>>, vector<6x98xf32>
    tpu.vector_store %arg16[%c138, %c0_104], %82 {strides = array<i32>} : memref<150x98xf32, #tpu.memory_space<vmem>>, vector<6x98xf32>,
    %c0_105 = arith.constant 0 : index
    %c32_106 = arith.constant 32 : index
    %84 = vector.load %arg15[%c0_105, %c32_106] : memref<6x130xf32, #tpu.memory_space<vmem>>, vector<6x98xf32>
    %c144 = arith.constant 144 : index
    %c0_107 = arith.constant 0 : index
    %85 = vector.load %arg16[%c144, %c0_107] : memref<150x98xf32, #tpu.memory_space<vmem>>, vector<6x98xf32>
    tpu.vector_store %arg16[%c144, %c0_107], %84 {strides = array<i32>} : memref<150x98xf32, #tpu.memory_space<vmem>>, vector<6x98xf32>,
    %c0_108 = arith.constant 0 : index
    %c0_109 = arith.constant 0 : index
    %86 = vector.load %arg4[%c0_108, %c0_109] : memref<16x150xf32, #tpu.memory_space<vmem>>, vector<16x150xf32>
    %c0_110 = arith.constant 0 : index
    %c0_111 = arith.constant 0 : index
    %87 = vector.load %arg16[%c0_110, %c0_111] : memref<150x98xf32, #tpu.memory_space<vmem>>, vector<150x98xf32>
    %cst_112 = arith.constant dense<0.000000e+00> : vector<16x98xf32>
    %88 = tpu.matmul %86, %87, %cst_112 {dimension_numbers = #tpu.dot_dimension_numbers<[1], [0], [0], [1], [0, 0, 1, 1], [], []>} : vector<16x150xf32>, vector<150x98xf32>, vector<16x98xf32> -> vector<16x98xf32>
    %c0_113 = arith.constant 0 : index
    %c0_114 = arith.constant 0 : index
    %89 = vector.load %arg5[%c0_113, %c0_114] : memref<16x1xf32, #tpu.memory_space<vmem>>, vector<16x1xf32>
    %90 = vector.broadcast %89 : vector<16x1xf32> to vector<16x98xf32>
    %91 = arith.addf %88, %90 : vector<16x98xf32>
    %c0_115 = arith.constant 0 : index
    %c0_116 = arith.constant 0 : index
    %92 = vector.load %arg17[%c0_115, %c0_116] : memref<16x98xf32, #tpu.memory_space<vmem>>, vector<16x98xf32>
    tpu.vector_store %arg17[%c0_115, %c0_116], %91 {strides = array<i32>} : memref<16x98xf32, #tpu.memory_space<vmem>>, vector<16x98xf32>,
    %c0_117 = arith.constant 0 : index
    %c0_118 = arith.constant 0 : index
    %93 = vector.load %arg17[%c0_117, %c0_118] : memref<16x98xf32, #tpu.memory_space<vmem>>, vector<16x1xf32>
    %c0_119 = arith.constant 0 : index
    %c1_120 = arith.constant 1 : index
    %94 = vector.load %arg17[%c0_119, %c1_120] : memref<16x98xf32, #tpu.memory_space<vmem>>, vector<16x1xf32>
    %95 = arith.maximumf %93, %94 : vector<16x1xf32>
    %c0_121 = arith.constant 0 : index
    %c7_122 = arith.constant 7 : index
    %96 = vector.load %arg17[%c0_121, %c7_122] : memref<16x98xf32, #tpu.memory_space<vmem>>, vector<16x1xf32>
    %c0_123 = arith.constant 0 : index
    %c8_124 = arith.constant 8 : index
    %97 = vector.load %arg17[%c0_123, %c8_124] : memref<16x98xf32, #tpu.memory_space<vmem>>, vector<16x1xf32>
    %98 = arith.maximumf %96, %97 : vector<16x1xf32>
    %99 = arith.maximumf %95, %98 : vector<16x1xf32>
    %c0_125 = arith.constant 0 : index
    %c0_126 = arith.constant 0 : index
    %100 = vector.load %arg18[%c0_125, %c0_126] : memref<16x2xf32, #tpu.memory_space<vmem>>, vector<16x1xf32>
    tpu.vector_store %arg18[%c0_125, %c0_126], %99 {strides = array<i32>} : memref<16x2xf32, #tpu.memory_space<vmem>>, vector<16x1xf32>,
    %c0_127 = arith.constant 0 : index
    %c49 = arith.constant 49 : index
    %101 = vector.load %arg17[%c0_127, %c49] : memref<16x98xf32, #tpu.memory_space<vmem>>, vector<16x1xf32>
    %c0_128 = arith.constant 0 : index
    %c50 = arith.constant 50 : index
    %102 = vector.load %arg17[%c0_128, %c50] : memref<16x98xf32, #tpu.memory_space<vmem>>, vector<16x1xf32>
    %103 = arith.maximumf %101, %102 : vector<16x1xf32>
    %c0_129 = arith.constant 0 : index
    %c56 = arith.constant 56 : index
    %104 = vector.load %arg17[%c0_129, %c56] : memref<16x98xf32, #tpu.memory_space<vmem>>, vector<16x1xf32>
    %c0_130 = arith.constant 0 : index
    %c57 = arith.constant 57 : index
    %105 = vector.load %arg17[%c0_130, %c57] : memref<16x98xf32, #tpu.memory_space<vmem>>, vector<16x1xf32>
    %106 = arith.maximumf %104, %105 : vector<16x1xf32>
    %107 = arith.maximumf %103, %106 : vector<16x1xf32>
    %c0_131 = arith.constant 0 : index
    %c1_132 = arith.constant 1 : index
    %108 = vector.load %arg18[%c0_131, %c1_132] : memref<16x2xf32, #tpu.memory_space<vmem>>, vector<16x1xf32>
    tpu.vector_store %arg18[%c0_131, %c1_132], %107 {strides = array<i32>} : memref<16x2xf32, #tpu.memory_space<vmem>>, vector<16x1xf32>,
    %c0_133 = arith.constant 0 : index
    %c0_134 = arith.constant 0 : index
    %109 = vector.load %arg6[%c0_133, %c0_134] : memref<120x16xf32, #tpu.memory_space<vmem>>, vector<120x16xf32>
    %c0_135 = arith.constant 0 : index
    %c0_136 = arith.constant 0 : index
    %110 = vector.load %arg18[%c0_135, %c0_136] : memref<16x2xf32, #tpu.memory_space<vmem>>, vector<16x2xf32>
    %cst_137 = arith.constant dense<0.000000e+00> : vector<120x2xf32>
    %111 = tpu.matmul %109, %110, %cst_137 {dimension_numbers = #tpu.dot_dimension_numbers<[1], [0], [0], [1], [0, 0, 1, 1], [], []>} : vector<120x16xf32>, vector<16x2xf32>, vector<120x2xf32> -> vector<120x2xf32>
    %c0_138 = arith.constant 0 : index
    %c0_139 = arith.constant 0 : index
    %112 = vector.load %arg7[%c0_138, %c0_139] : memref<120x1xf32, #tpu.memory_space<vmem>>, vector<120x1xf32>
    %113 = vector.broadcast %112 : vector<120x1xf32> to vector<120x2xf32>
    %114 = arith.addf %111, %113 : vector<120x2xf32>
    %c0_140 = arith.constant 0 : index
    %c0_141 = arith.constant 0 : index
    %115 = vector.load %arg8[%c0_140, %c0_141] : memref<84x120xf32, #tpu.memory_space<vmem>>, vector<84x120xf32>
    %cst_142 = arith.constant dense<0.000000e+00> : vector<84x2xf32>
    %116 = tpu.matmul %115, %114, %cst_142 {dimension_numbers = #tpu.dot_dimension_numbers<[1], [0], [0], [1], [0, 0, 1, 1], [], []>} : vector<84x120xf32>, vector<120x2xf32>, vector<84x2xf32> -> vector<84x2xf32>
    %c0_143 = arith.constant 0 : index
    %c0_144 = arith.constant 0 : index
    %117 = vector.load %arg9[%c0_143, %c0_144] : memref<84x1xf32, #tpu.memory_space<vmem>>, vector<84x1xf32>
    %118 = vector.broadcast %117 : vector<84x1xf32> to vector<84x2xf32>
    %119 = arith.addf %116, %118 : vector<84x2xf32>
    %c0_145 = arith.constant 0 : index
    %c0_146 = arith.constant 0 : index
    %120 = vector.load %arg10[%c0_145, %c0_146] : memref<10x84xf32, #tpu.memory_space<vmem>>, vector<10x84xf32>
    %cst_147 = arith.constant dense<0.000000e+00> : vector<10x2xf32>
    %121 = tpu.matmul %120, %119, %cst_147 {dimension_numbers = #tpu.dot_dimension_numbers<[1], [0], [0], [1], [0, 0, 1, 1], [], []>} : vector<10x84xf32>, vector<84x2xf32>, vector<10x2xf32> -> vector<10x2xf32>
    %c0_148 = arith.constant 0 : index
    %c0_149 = arith.constant 0 : index
    %122 = vector.load %arg11[%c0_148, %c0_149] : memref<10x1xf32, #tpu.memory_space<vmem>>, vector<10x1xf32>
    %123 = vector.broadcast %122 : vector<10x1xf32> to vector<10x2xf32>
    %124 = arith.addf %121, %123 : vector<10x2xf32>
    %c0_150 = arith.constant 0 : index
    %c0_151 = arith.constant 0 : index
    %125 = vector.load %arg12[%c0_150, %c0_151] : memref<10x2xf32, #tpu.memory_space<vmem>>, vector<10x2xf32>
    tpu.vector_store %arg12[%c0_150, %c0_151], %124 {strides = array<i32>} : memref<10x2xf32, #tpu.memory_space<vmem>>, vector<10x2xf32>,
    return
  }
}

</mosaic_0001>

<llo_original>
// kernel: lenet_forward.1
$region0: #{lenet_forward.1}
  #allocation0 [shape = 'u32[]', space=smem, size = 0x4, offset = 0x4, fixed_abs, tag = 'smem constant byte address 0x4 - core index']
  #allocation1 [shape = 'u32[144,128]{1,0:T(1,128)}', space=vmem, size = 0x12000, scoped, tag = 'internal scratch']
  #allocation2 [shape = 'f32[36,512]{1,0:T(8,128)}', space=vmem, size = 0x14000, scoped, tag = 'scratch operand']
  #allocation3 [shape = 'f32[6,512]{1,0:T(8,128)}', space=vmem, size = 0x4000, scoped, tag = 'scratch operand']
  #allocation4 [shape = 'f32[6,130]{1,0:T(8,128)}', space=vmem, size = 0x2000, scoped, tag = 'scratch operand']
  #allocation5 [shape = 'f32[150,98]{1,0:T(8,128)}', space=vmem, size = 0x13000, scoped, tag = 'scratch operand']
  #allocation6 [shape = 'f32[16,98]{1,0:T(8,128)}', space=vmem, size = 0x2000, scoped, tag = 'scratch operand']
  #allocation7 [shape = 'f32[16,2]{1,0:T(8,128)}', space=vmem, size = 0x2000, scoped, tag = 'scratch operand']
  %s0 = inlined_call_operand.vmem [shape: f32[4,546], index: 0, kind: input, shape index: {}]
  %s1 = inlined_call_operand.vmem [shape: f32[6,36], index: 1, kind: input, shape index: {}]
  %s2 = inlined_call_operand.vmem [shape: f32[6,1], index: 2, kind: input, shape index: {}]
  %s3 = inlined_call_operand.vmem [shape: bf16[461,130], index: 3, kind: input, shape index: {}]
  %s4 = inlined_call_operand.vmem [shape: f32[16,150], index: 4, kind: input, shape index: {}]
  %s5 = inlined_call_operand.vmem [shape: f32[16,1], index: 5, kind: input, shape index: {}]
  %s6 = inlined_call_operand.vmem [shape: f32[120,16], index: 6, kind: input, shape index: {}]
  %s7 = inlined_call_operand.vmem [shape: f32[120,1], index: 7, kind: input, shape index: {}]
  %s8 = inlined_call_operand.vmem [shape: f32[84,120], index: 8, kind: input, shape index: {}]
  %s9 = inlined_call_operand.vmem [shape: f32[84,1], index: 9, kind: input, shape index: {}]
  %s10 = inlined_call_operand.vmem [shape: f32[10,84], index: 10, kind: input, shape index: {}]
  %s11 = inlined_call_operand.vmem [shape: f32[10,1], index: 11, kind: input, shape index: {}]
  %s12 = inlined_call_operand.vmem [shape: f32[10,2], index: 12, kind: output, shape index: {}]
  %s13 = sld [smem:[#allocation0]]
  $region58: #{lenet_forward.1} parent=0
    _
  %s15 = ssub.s32 1, %s13
  %s16 = scalar_select 0, %s15, %s13
  // Predicated region
  $region2: #{lenet_forward.1} parent=0 // pred_check
    _
  $region3: #{lenet_forward.1} parent=0 // pred_check_branch
    %18 = sbr.rel (0) target = $region5
  $region4: #{lenet_forward.1} parent=0 // pred_region
    _
  $region5: #{lenet_forward.1} parent=0 // pred_fallthru
    _
  // Predicated region
  $region6: #{lenet_forward.1} parent=0 // pred_check
    _
  $region7: #{lenet_forward.1} parent=0 // pred_check_branch
    %20 = sbr.rel (0) target = $region9
  $region8: #{lenet_forward.1} parent=0 // pred_region
    _
  $region9: #{lenet_forward.1} parent=0 // pred_fallthru
    _
  // Predicated region
  $region10: #{lenet_forward.1} parent=0 // pred_check
    _
  $region11: #{lenet_forward.1} parent=0 // pred_check_branch
    %22 = sbr.rel (0) target = $region13
  $region12: #{lenet_forward.1} parent=0 // pred_region
    _
  $region13: #{lenet_forward.1} parent=0 // pred_fallthru
    _
  // Predicated region
  $region14: #{lenet_forward.1} parent=0 // pred_check
    _
  $region15: #{lenet_forward.1} parent=0 // pred_check_branch
    %24 = sbr.rel (0) target = $region17
  $region16: #{lenet_forward.1} parent=0 // pred_region
    _
  $region17: #{lenet_forward.1} parent=0 // pred_fallthru
    _
  // Predicated region
  $region18: #{lenet_forward.1} parent=0 // pred_check
    _
  $region19: #{lenet_forward.1} parent=0 // pred_check_branch
    %26 = sbr.rel (0) target = $region21
  $region20: #{lenet_forward.1} parent=0 // pred_region
    _
  $region21: #{lenet_forward.1} parent=0 // pred_fallthru
    _
  // Predicated region
  $region22: #{lenet_forward.1} parent=0 // pred_check
    _
  $region23: #{lenet_forward.1} parent=0 // pred_check_branch
    %28 = sbr.rel (0) target = $region25
  $region24: #{lenet_forward.1} parent=0 // pred_region
    _
  $region25: #{lenet_forward.1} parent=0 // pred_fallthru
    _
  // Predicated region
  $region26: #{lenet_forward.1} parent=0 // pred_check
    _
  $region27: #{lenet_forward.1} parent=0 // pred_check_branch
    %30 = sbr.rel (0) target = $region29
  $region28: #{lenet_forward.1} parent=0 // pred_region
    _
  $region29: #{lenet_forward.1} parent=0 // pred_fallthru
    _
  // Predicated region
  $region30: #{lenet_forward.1} parent=0 // pred_check
    _
  $region31: #{lenet_forward.1} parent=0 // pred_check_branch
    %32 = sbr.rel (0) target = $region33
  $region32: #{lenet_forward.1} parent=0 // pred_region
    _
  $region33: #{lenet_forward.1} parent=0 // pred_fallthru
    _
  // Predicated region
  $region34: #{lenet_forward.1} parent=0 // pred_check
    _
  $region35: #{lenet_forward.1} parent=0 // pred_check_branch
    %34 = sbr.rel (0) target = $region37
  $region36: #{lenet_forward.1} parent=0 // pred_region
    _
  $region37: #{lenet_forward.1} parent=0 // pred_fallthru
    _
  // Predicated region
  $region38: #{lenet_forward.1} parent=0 // pred_check
    _
  $region39: #{lenet_forward.1} parent=0 // pred_check_branch
    %36 = sbr.rel (0) target = $region41
  $region40: #{lenet_forward.1} parent=0 // pred_region
    _
  $region41: #{lenet_forward.1} parent=0 // pred_fallthru
    _
  // Predicated region
  $region42: #{lenet_forward.1} parent=0 // pred_check
    _
  $region43: #{lenet_forward.1} parent=0 // pred_check_branch
    %38 = sbr.rel (0) target = $region45
  $region44: #{lenet_forward.1} parent=0 // pred_region
    _
  $region45: #{lenet_forward.1} parent=0 // pred_fallthru
    _
  // Predicated region
  $region46: #{lenet_forward.1} parent=0 // pred_check
    _
  $region47: #{lenet_forward.1} parent=0 // pred_check_branch
    %40 = sbr.rel (0) target = $region49
  $region48: #{lenet_forward.1} parent=0 // pred_region
    _
  $region49: #{lenet_forward.1} parent=0 // pred_fallthru
    _
  %v41 = vld [vmem:[%s0] sm:$0xff]
  %v42 = vld [vmem:[%s0 + $0x8] sm:$0xff]
  %v45 = vcombine.high %v41, %v41
  %v46 = vcombine.high %v42, %v42
  %49 = vst [vmem:[#allocation2] sm:$0xf] %v41
  %50 = vst [vmem:[#allocation2 + $0x8] sm:$0xf] %v45
  %51 = vst [vmem:[#allocation2 + $0x10] sm:$0xf] %v42
  %52 = vst [vmem:[#allocation2 + $0x18] sm:$0xf] %v46
  %v53 = vld [vmem:[%s0] sm:$0xff]
  %v54 = vld [vmem:[%s0 + $0x8] sm:$0xff]
  %v55 = vld [vmem:[%s0 + $0x10] sm:$0xf]
  %v59 = vcombine.low %v53, %v53
  %v60 = vcombine.low %v54, %v54
  %v61 = vcombine.low %v55, %v55
  %62 = vrot.lane.b32.xlu0 %v59, 127
  %v63 = vpop.permute.xlu0 %62
  %64 = vrot.lane.b32.xlu0 %v53, 127
  %v65 = vpop.permute.xlu0 %64
  %66 = vrot.lane.b32.xlu0 %v60, 127
  %v67 = vpop.permute.xlu0 %66
  %68 = vrot.lane.b32.xlu0 %v54, 127
  %v69 = vpop.permute.xlu0 %68
  %70 = vrot.lane.b32.xlu0 %v61, 127
  %v71 = vpop.permute.xlu0 %70
  %vm72 = vcmask 1039360
  %v73 = vsel %vm72, %v63, %v65
  %v74 = vsel %vm72, %v65, %v67
  %v75 = vsel %vm72, %v67, %v69
  %v76 = vsel %vm72, %v69, %v71
  %81 = vst [vmem:[#allocation2] sm:$0xf0] %v73
  %82 = vst [vmem:[#allocation2 + $0x8] sm:$0xf0] %v74
  %83 = vst [vmem:[#allocation2 + $0x10] sm:$0xf0] %v75
  %84 = vst [vmem:[#allocation2 + $0x18] sm:$0xf0] %v76
  %v85 = vld [vmem:[%s0] sm:$0xff]
  %v86 = vld [vmem:[%s0 + $0x8] sm:$0xff]
  %v87 = vld [vmem:[%s0 + $0x10] sm:$0xf]
  %v91 = vcombine.high %v85, %v85
  %v92 = vcombine.high %v86, %v86
  %93 = vrot.lane.b32.xlu0 %v85, 126
  %v94 = vpop.permute.xlu0 %93
  %95 = vrot.lane.b32.xlu0 %v91, 126
  %v96 = vpop.permute.xlu0 %95
  %97 = vrot.lane.b32.xlu0 %v86, 126
  %v98 = vpop.permute.xlu0 %97
  %99 = vrot.lane.b32.xlu0 %v92, 126
  %v100 = vpop.permute.xlu0 %99
  %101 = vrot.lane.b32.xlu0 %v87, 126
  %v102 = vpop.permute.xlu0 %101
  %vm103 = vcmask 1031168
  %v104 = vsel %vm103, %v94, %v96
  %v105 = vsel %vm103, %v96, %v98
  %v106 = vsel %vm103, %v98, %v100
  %v107 = vsel %vm103, %v100, %v102
  %112 = vst [vmem:[#allocation2 + $0x20] sm:$0xf] %v104
  %113 = vst [vmem:[#allocation2 + $0x28] sm:$0xf] %v105
  %114 = vst [vmem:[#allocation2 + $0x30] sm:$0xf] %v106
  %115 = vst [vmem:[#allocation2 + $0x38] sm:$0xf] %v107
  %v116 = vld [vmem:[%s0] sm:$0xff]
  %v117 = vld [vmem:[%s0 + $0x8] sm:$0xff]
  %v118 = vld [vmem:[%s0 + $0x10] sm:$0xf]
  %v122 = vcombine.low %v116, %v116
  %v123 = vcombine.low %v117, %v117
  %v124 = vcombine.low %v118, %v118
  %125 = vrot.lane.b32.xlu0 %v122, 112
  %v126 = vpop.permute.xlu0 %125
  %127 = vrot.lane.b32.xlu0 %v116, 112
  %v128 = vpop.permute.xlu0 %127
  %129 = vrot.lane.b32.xlu0 %v123, 112
  %v130 = vpop.permute.xlu0 %129
  %131 = vrot.lane.b32.xlu0 %v117, 112
  %v132 = vpop.permute.xlu0 %131
  %133 = vrot.lane.b32.xlu0 %v124, 112
  %v134 = vpop.permute.xlu0 %133
  %vm135 = vcmask 916480
  %v136 = vsel %vm135, %v126, %v128
  %v137 = vsel %vm135, %v128, %v130
  %v138 = vsel %vm135, %v130, %v132
  %v139 = vsel %vm135, %v132, %v134
  %144 = vst [vmem:[#allocation2 + $0x20] sm:$0xf0] %v136
  %145 = vst [vmem:[#allocation2 + $0x28] sm:$0xf0] %v137
  %146 = vst [vmem:[#allocation2 + $0x30] sm:$0xf0] %v138
  %147 = vst [vmem:[#allocation2 + $0x38] sm:$0xf0] %v139
  %v148 = vld [vmem:[%s0] sm:$0xff]
  %v149 = vld [vmem:[%s0 + $0x8] sm:$0xff]
  %v150 = vld [vmem:[%s0 + $0x10] sm:$0xf]
  %v154 = vcombine.high %v148, %v148
  %v155 = vcombine.high %v149, %v149
  %156 = vrot.lane.b32.xlu0 %v148, 111
  %v157 = vpop.permute.xlu0 %156
  %158 = vrot.lane.b32.xlu0 %v154, 111
  %v159 = vpop.permute.xlu0 %158
  %160 = vrot.lane.b32.xlu0 %v149, 111
  %v161 = vpop.permute.xlu0 %160
  %162 = vrot.lane.b32.xlu0 %v155, 111
  %v163 = vpop.permute.xlu0 %162
  %164 = vrot.lane.b32.xlu0 %v150, 111
  %v165 = vpop.permute.xlu0 %164
  %vm166 = vcmask 908288
  %v167 = vsel %vm166, %v157, %v159
  %v168 = vsel %vm166, %v159, %v161
  %v169 = vsel %vm166, %v161, %v163
  %v170 = vsel %vm166, %v163, %v165
  %175 = vst [vmem:[#allocation2 + $0x40] sm:$0xf] %v167
  %176 = vst [vmem:[#allocation2 + $0x48] sm:$0xf] %v168
  %177 = vst [vmem:[#allocation2 + $0x50] sm:$0xf] %v169
  %178 = vst [vmem:[#allocation2 + $0x58] sm:$0xf] %v170
  %v179 = vld [vmem:[%s0] sm:$0xff]
  %v180 = vld [vmem:[%s0 + $0x8] sm:$0xff]
  %v181 = vld [vmem:[%s0 + $0x10] sm:$0xf]
  %v185 = vcombine.low %v179, %v179
  %v186 = vcombine.low %v180, %v180
  %v187 = vcombine.low %v181, %v181
  %188 = vrot.lane.b32.xlu0 %v185, 110
  %v189 = vpop.permute.xlu0 %188
  %190 = vrot.lane.b32.xlu0 %v179, 110
  %v191 = vpop.permute.xlu0 %190
  %192 = vrot.lane.b32.xlu0 %v186, 110
  %v193 = vpop.permute.xlu0 %192
  %194 = vrot.lane.b32.xlu0 %v180, 110
  %v195 = vpop.permute.xlu0 %194
  %196 = vrot.lane.b32.xlu0 %v187, 110
  %v197 = vpop.permute.xlu0 %196
  %vm198 = vcmask 900096
  %v199 = vsel %vm198, %v189, %v191
  %v200 = vsel %vm198, %v191, %v193
  %v201 = vsel %vm198, %v193, %v195
  %v202 = vsel %vm198, %v195, %v197
  %207 = vst [vmem:[#allocation2 + $0x40] sm:$0xf0] %v199
  %208 = vst [vmem:[#allocation2 + $0x48] sm:$0xf0] %v200
  %209 = vst [vmem:[#allocation2 + $0x50] sm:$0xf0] %v201
  %210 = vst [vmem:[#allocation2 + $0x58] sm:$0xf0] %v202
  %v211 = vld [vmem:[%s0] sm:$0xff]
  %v212 = vld [vmem:[%s0 + $0x8] sm:$0xff]
  %v213 = vld [vmem:[%s0 + $0x10] sm:$0xf]
  %v217 = vcombine.high %v211, %v211
  %v218 = vcombine.high %v212, %v212
  %219 = vrot.lane.b32.xlu0 %v211, 96
  %v220 = vpop.permute.xlu0 %219
  %221 = vrot.lane.b32.xlu0 %v217, 96
  %v222 = vpop.permute.xlu0 %221
  %223 = vrot.lane.b32.xlu0 %v212, 96
  %v224 = vpop.permute.xlu0 %223
  %225 = vrot.lane.b32.xlu0 %v218, 96
  %v226 = vpop.permute.xlu0 %225
  %227 = vrot.lane.b32.xlu0 %v213, 96
  %v228 = vpop.permute.xlu0 %227
  %vm229 = vcmask 785408
  %v230 = vsel %vm229, %v220, %v222
  %v231 = vsel %vm229, %v222, %v224
  %v232 = vsel %vm229, %v224, %v226
  %v233 = vsel %vm229, %v226, %v228
  %238 = vst [vmem:[#allocation2 + $0x60] sm:$0xf] %v230
  %239 = vst [vmem:[#allocation2 + $0x68] sm:$0xf] %v231
  %240 = vst [vmem:[#allocation2 + $0x70] sm:$0xf] %v232
  %241 = vst [vmem:[#allocation2 + $0x78] sm:$0xf] %v233
  %v242 = vld [vmem:[%s0] sm:$0xff]
  %v243 = vld [vmem:[%s0 + $0x8] sm:$0xff]
  %v244 = vld [vmem:[%s0 + $0x10] sm:$0xf]
  %v248 = vcombine.low %v242, %v242
  %v249 = vcombine.low %v243, %v243
  %v250 = vcombine.low %v244, %v244
  %251 = vrot.lane.b32.xlu0 %v248, 95
  %v252 = vpop.permute.xlu0 %251
  %253 = vrot.lane.b32.xlu0 %v242, 95
  %v254 = vpop.permute.xlu0 %253
  %255 = vrot.lane.b32.xlu0 %v249, 95
  %v256 = vpop.permute.xlu0 %255
  %257 = vrot.lane.b32.xlu0 %v243, 95
  %v258 = vpop.permute.xlu0 %257
  %259 = vrot.lane.b32.xlu0 %v250, 95
  %v260 = vpop.permute.xlu0 %259
  %vm261 = vcmask 777216
  %v262 = vsel %vm261, %v252, %v254
  %v263 = vsel %vm261, %v254, %v256
  %v264 = vsel %vm261, %v256, %v258
  %v265 = vsel %vm261, %v258, %v260
  %270 = vst [vmem:[#allocation2 + $0x60] sm:$0xf0] %v262
  %271 = vst [vmem:[#allocation2 + $0x68] sm:$0xf0] %v263
  %272 = vst [vmem:[#allocation2 + $0x70] sm:$0xf0] %v264
  %273 = vst [vmem:[#allocation2 + $0x78] sm:$0xf0] %v265
  %v274 = vld [vmem:[%s0] sm:$0xff]
  %v275 = vld [vmem:[%s0 + $0x8] sm:$0xff]
  %v276 = vld [vmem:[%s0 + $0x10] sm:$0xf]
  %v280 = vcombine.high %v274, %v274
  %v281 = vcombine.high %v275, %v275
  %282 = vrot.lane.b32.xlu0 %v274, 94
  %v283 = vpop.permute.xlu0 %282
  %284 = vrot.lane.b32.xlu0 %v280, 94
  %v285 = vpop.permute.xlu0 %284
  %286 = vrot.lane.b32.xlu0 %v275, 94
  %v287 = vpop.permute.xlu0 %286
  %288 = vrot.lane.b32.xlu0 %v281, 94
  %v289 = vpop.permute.xlu0 %288
  %290 = vrot.lane.b32.xlu0 %v276, 94
  %v291 = vpop.permute.xlu0 %290
  %vm292 = vcmask 769024
  %v293 = vsel %vm292, %v283, %v285
  %v294 = vsel %vm292, %v285, %v287
  %v295 = vsel %vm292, %v287, %v289
  %v296 = vsel %vm292, %v289, %v291
  %301 = vst [vmem:[#allocation2 + $0x80] sm:$0xf] %v293
  %302 = vst [vmem:[#allocation2 + $0x88] sm:$0xf] %v294
  %303 = vst [vmem:[#allocation2 + $0x90] sm:$0xf] %v295
  %304 = vst [vmem:[#allocation2 + $0x98] sm:$0xf] %v296
  %v305 = vld [vmem:[%s1] sm:$0x3f]
  %v306 = vld [vmem:[#allocation2] sm:$0xff]
  %v307 = vld [vmem:[#allocation2 + $0x8] sm:$0xff]
  %v308 = vld [vmem:[#allocation2 + $0x10] sm:$0xff]
  %v309 = vld [vmem:[#allocation2 + $0x18] sm:$0xff]
  %v310 = vld [vmem:[#allocation2 + $0x20] sm:$0xff]
  %v311 = vld [vmem:[#allocation2 + $0x28] sm:$0xff]
  %v312 = vld [vmem:[#allocation2 + $0x30] sm:$0xff]
  %v313 = vld [vmem:[#allocation2 + $0x38] sm:$0xff]
  %v314 = vld [vmem:[#allocation2 + $0x40] sm:$0xff]
  %v315 = vld [vmem:[#allocation2 + $0x48] sm:$0xff]
  %v316 = vld [vmem:[#allocation2 + $0x50] sm:$0xff]
  %v317 = vld [vmem:[#allocation2 + $0x58] sm:$0xff]
  %v318 = vld [vmem:[#allocation2 + $0x60] sm:$0xff]
  %v319 = vld [vmem:[#allocation2 + $0x68] sm:$0xff]
  %v320 = vld [vmem:[#allocation2 + $0x70] sm:$0xff]
  %v321 = vld [vmem:[#allocation2 + $0x78] sm:$0xff]
  %v322 = vld [vmem:[#allocation2 + $0x80] sm:$0xf]
  %v323 = vld [vmem:[#allocation2 + $0x88] sm:$0xf]
  %v324 = vld [vmem:[#allocation2 + $0x90] sm:$0xf]
  %v325 = vld [vmem:[#allocation2 + $0x98] sm:$0xf]
  %v326 = vld [vmem:[%s2] sm:$0x3f]
  %328 = vset.pattern.permute.xlu0 0
  %329 = vperm.xlu0 %328, %v326
  %v330 = vpop.permute.xlu0 %329
  %vm332 = vcmask 293888
  %v334 = vsel %vm332, %v305, 0
  %vm336 = vcmask 1043456
  %v338 = vsel %vm336, %v322, 0
  %v341 = vsel %vm336, %v323, 0
  %v344 = vsel %vm336, %v324, 0
  %v347 = vsel %vm336, %v325, 0
  %349 = vmatprep.subr.mxu0 %v307
  %350 = vmatpush1.msra.mxu0 %v306
  %351 = vmatprep.subr.mxu0 %v311
  %352 = vmatpush1.msra.mxu0 %v310
  %353 = vmatprep.subr.mxu0 %v315
  %354 = vmatpush1.msra.mxu0 %v314
  %355 = vmatprep.subr.mxu0 %v319
  %356 = vmatpush1.msra.mxu0 %v318
  %357 = vmatprep.subr.mxu0 %v341
  %358 = vmatpush1.msra.mxu0 %v338
  %359 = vmatprep.subr.mxu0 0.0
  %360 = vmatpush1.msra.mxu0 0.0
  %361 = vmatprep.subr.mxu0 0.0
  %362 = vmatpush1.msra.mxu0 0.0
  %363 = vmatprep.subr.mxu0 0.0
  %364 = vmatpush1.msra.mxu0 0.0
  %365 = vmatprep.subr.mxu0 0.0
  %366 = vmatpush1.msra.mxu0 0.0
  %367 = vmatprep.subr.mxu0 0.0
  %368 = vmatpush1.msra.mxu0 0.0
  %369 = vmatprep.subr.mxu0 0.0
  %370 = vmatpush1.msra.mxu0 0.0
  %371 = vmatprep.subr.mxu0 0.0
  %372 = vmatpush1.msra.mxu0 0.0
  %373 = vmatprep.subr.mxu0 0.0
  %374 = vmatpush1.msra.mxu0 0.0
  %375 = vmatprep.subr.mxu0 0.0
  %376 = vmatpush1.msra.mxu0 0.0
  %377 = vmatprep.subr.mxu0 0.0
  %378 = vmatpush1.msra.mxu0 0.0
  %379 = vmatprep.subr.mxu0 0.0
  %380 = vmatpush1.msra.mxu0 0.0
  %381 = vmatprep.subr.mxu0 0.0
  %382 = vmatpush1.msra.mxu0 0.0
  %383 = vmatprep.subr.mxu0 0.0
  %384 = vmatpush1.msra.mxu0 0.0
  %385 = vmatprep.subr.mxu0 0.0
  %386 = vmatpush1.msra.mxu0 0.0
  %387 = vmatprep.subr.mxu0 0.0
  %388 = vmatpush1.msra.mxu0 0.0
  %389 = vmatprep.subr.mxu0 0.0
  %390 = vmatpush1.msra.mxu0 0.0
  %391 = vmatprep.subr.mxu0 0.0
  %392 = vmatpush1.msra.mxu0 0.0
  %393 = vmatprep.subr.mxu0 0.0
  %394 = vmatpush1.msra.mxu0 0.0
  %395 = vmatprep.subr.mxu0 0.0
  %396 = vmatpush1.msra.mxu0 0.0
  %397 = vmatprep.subr.mxu0 0.0
  %398 = vmatpush1.msra.mxu0 0.0
  %399 = vmatprep.subr.mxu0 0.0
  %400 = vmatpush1.msra.mxu0 0.0
  %401 = vmatprep.subr.mxu0 0.0
  %402 = vmatpush1.msra.mxu0 0.0
  %403 = vmatprep.subr.mxu0 0.0
  %404 = vmatpush1.msra.mxu0 0.0
  %405 = vmatprep.subr.mxu0 0.0
  %406 = vmatpush1.msra.mxu0 0.0
  %407 = vmatprep.subr.mxu0 0.0
  %408 = vmatpush1.msra.mxu0 0.0
  %409 = vmatprep.subr.mxu0 0.0
  %410 = vmatpush1.msra.mxu0 0.0
  %411 = vmatprep.subr.mxu0 0.0
  %412 = vmatpush1.msra.mxu0 0.0
  %413 = vmatprep.mubr.f32.mxu0 0.0
  %414 = vmatmul.mubr.f32.gmra.mrb[0].mxu0 %v334
  %v415 = vpop.f32.mrb[0].mxu0
  %v416 = vadd.f32 %v330, %v415
  %v417 = vpop.f32.mrb[0].mxu0
  %v418 = vadd.f32 %v330, %v417
  %419 = vdwg.mxu0
  %420 = vmatprep.subr.mxu0 %v309
  %421 = vmatpush1.msra.mxu0 %v308
  %422 = vmatprep.subr.mxu0 %v313
  %423 = vmatpush1.msra.mxu0 %v312
  %424 = vmatprep.subr.mxu0 %v317
  %425 = vmatpush1.msra.mxu0 %v316
  %426 = vmatprep.subr.mxu0 %v321
  %427 = vmatpush1.msra.mxu0 %v320
  %428 = vmatprep.subr.mxu0 %v347
  %429 = vmatpush1.msra.mxu0 %v344
  %430 = vmatprep.subr.mxu0 0.0
  %431 = vmatpush1.msra.mxu0 0.0
  %432 = vmatprep.subr.mxu0 0.0
  %433 = vmatpush1.msra.mxu0 0.0
  %434 = vmatprep.subr.mxu0 0.0
  %435 = vmatpush1.msra.mxu0 0.0
  %436 = vmatprep.subr.mxu0 0.0
  %437 = vmatpush1.msra.mxu0 0.0
  %438 = vmatprep.subr.mxu0 0.0
  %439 = vmatpush1.msra.mxu0 0.0
  %440 = vmatprep.subr.mxu0 0.0
  %441 = vmatpush1.msra.mxu0 0.0
  %442 = vmatprep.subr.mxu0 0.0
  %443 = vmatpush1.msra.mxu0 0.0
  %444 = vmatprep.subr.mxu0 0.0
  %445 = vmatpush1.msra.mxu0 0.0
  %446 = vmatprep.subr.mxu0 0.0
  %447 = vmatpush1.msra.mxu0 0.0
  %448 = vmatprep.subr.mxu0 0.0
  %449 = vmatpush1.msra.mxu0 0.0
  %450 = vmatprep.subr.mxu0 0.0
  %451 = vmatpush1.msra.mxu0 0.0
  %452 = vmatprep.subr.mxu0 0.0
  %453 = vmatpush1.msra.mxu0 0.0
  %454 = vmatprep.subr.mxu0 0.0
  %455 = vmatpush1.msra.mxu0 0.0
  %456 = vmatprep.subr.mxu0 0.0
  %457 = vmatpush1.msra.mxu0 0.0
  %458 = vmatprep.subr.mxu0 0.0
  %459 = vmatpush1.msra.mxu0 0.0
  %460 = vmatprep.subr.mxu0 0.0
  %461 = vmatpush1.msra.mxu0 0.0
  %462 = vmatprep.subr.mxu0 0.0
  %463 = vmatpush1.msra.mxu0 0.0
  %464 = vmatprep.subr.mxu0 0.0
  %465 = vmatpush1.msra.mxu0 0.0
  %466 = vmatprep.subr.mxu0 0.0
  %467 = vmatpush1.msra.mxu0 0.0
  %468 = vmatprep.subr.mxu0 0.0
  %469 = vmatpush1.msra.mxu0 0.0
  %470 = vmatprep.subr.mxu0 0.0
  %471 = vmatpush1.msra.mxu0 0.0
  %472 = vmatprep.subr.mxu0 0.0
  %473 = vmatpush1.msra.mxu0 0.0
  %474 = vmatprep.subr.mxu0 0.0
  %475 = vmatpush1.msra.mxu0 0.0
  %476 = vmatprep.subr.mxu0 0.0
  %477 = vmatpush1.msra.mxu0 0.0
  %478 = vmatprep.subr.mxu0 0.0
  %479 = vmatpush1.msra.mxu0 0.0
  %480 = vmatprep.subr.mxu0 0.0
  %481 = vmatpush1.msra.mxu0 0.0
  %482 = vmatprep.subr.mxu0 0.0
  %483 = vmatpush1.msra.mxu0 0.0
  %484 = vmatprep.mubr.f32.mxu0 0.0
  %485 = vmatmul.mubr.f32.gmra.mrb[0].mxu0 %v334
  %v486 = vpop.f32.mrb[0].mxu0
  %v487 = vadd.f32 %v330, %v486
  %v488 = vpop.f32.mrb[0].mxu0
  %v489 = vadd.f32 %v330, %v488
  %490 = vdwg.mxu0
  %491 = vst [vmem:[#allocation3] sm:$0x3f] %v416
  %492 = vst [vmem:[#allocation3 + $0x8] sm:$0x3f] %v418
  %493 = vst [vmem:[#allocation3 + $0x10] sm:$0x3f] %v487
  %494 = vst [vmem:[#allocation3 + $0x18] sm:$0x3f] %v489
  %v495 = vld [vmem:[#allocation3] sm:$0x3f]
  %v496 = vld [vmem:[#allocation3 + $0x8] sm:$0x3f]
  %v497 = vld [vmem:[#allocation3 + $0x10] sm:$0x3f]
  %v498 = vld [vmem:[#allocation3 + $0x18] sm:$0x3f]
  %503 = vrot.lane.b32.xlu0 %v495, 127
  %v504 = vpop.permute.xlu0 %503
  %505 = vrot.lane.b32.xlu0 %v496, 127
  %v506 = vpop.permute.xlu0 %505
  %507 = vrot.lane.b32.xlu0 %v497, 127
  %v508 = vpop.permute.xlu0 %507
  %509 = vrot.lane.b32.xlu0 %v498, 127
  %v510 = vpop.permute.xlu0 %509
  %v511 = vsel %vm72, %v504, %v506
  %v512 = vsel %vm72, %v506, %v508
  %v513 = vsel %vm72, %v508, %v510
  %v518 = vmax.f32 %v495, %v511
  %v519 = vmax.f32 %v496, %v512
  %v520 = vmax.f32 %v497, %v513
  %v521 = vmax.f32 %v498, %v510
  %526 = vrot.lane.b32.xlu0 %v518, 112
  %v527 = vpop.permute.xlu0 %526
  %528 = vrot.lane.b32.xlu0 %v519, 112
  %v529 = vpop.permute.xlu0 %528
  %530 = vrot.lane.b32.xlu0 %v520, 112
  %v531 = vpop.permute.xlu0 %530
  %532 = vrot.lane.b32.xlu0 %v521, 112
  %v533 = vpop.permute.xlu0 %532
  %v534 = vsel %vm135, %v527, %v529
  %v535 = vsel %vm135, %v529, %v531
  %v536 = vsel %vm135, %v531, %v533
  %v541 = vmax.f32 %v518, %v534
  %v542 = vmax.f32 %v519, %v535
  %v543 = vmax.f32 %v520, %v536
  %v544 = vmax.f32 %v521, %v533
  %v545 = vld [vmem:[%s3] sm:$0xff]
  %v546 = vld [vmem:[%s3 + $0x8] sm:$0xff]
  %v547 = vld [vmem:[%s3 + $0x10] sm:$0xff]
  %v548 = vld [vmem:[%s3 + $0x18] sm:$0xff]
  %v549 = vld [vmem:[%s3 + $0x20] sm:$0xff]
  %v550 = vld [vmem:[%s3 + $0x28] sm:$0xff]
  %v551 = vld [vmem:[%s3 + $0x30] sm:$0xff]
  %v552 = vld [vmem:[%s3 + $0x38] sm:$0xff]
  %v553 = vld [vmem:[%s3 + $0x40] sm:$0xff]
  %v554 = vld [vmem:[%s3 + $0x48] sm:$0xff]
  %v555 = vld [vmem:[%s3 + $0x50] sm:$0xff]
  %v556 = vld [vmem:[%s3 + $0x58] sm:$0xff]
  %v557 = vld [vmem:[%s3 + $0x60] sm:$0xff]
  %v558 = vld [vmem:[%s3 + $0x68] sm:$0xff]
  %v559 = vld [vmem:[%s3 + $0x70] sm:$0xff]
  %v560 = vld [vmem:[%s3 + $0x78] sm:$0xff]
  %v561 = vld [vmem:[%s3 + $0x80] sm:$0xff]
  %v562 = vld [vmem:[%s3 + $0x88] sm:$0xff]
  %v563 = vld [vmem:[%s3 + $0x90] sm:$0xff]
  %v564 = vld [vmem:[%s3 + $0x98] sm:$0xff]
  %v565 = vld [vmem:[%s3 + $0xa0] sm:$0xff]
  %v566 = vld [vmem:[%s3 + $0xa8] sm:$0xff]
  %v567 = vld [vmem:[%s3 + $0xb0] sm:$0xff]
  %v568 = vld [vmem:[%s3 + $0xb8] sm:$0xff]
  %v569 = vld [vmem:[%s3 + $0xc0] sm:$0xff]
  %v570 = vld [vmem:[%s3 + $0xc8] sm:$0xff]
  %v571 = vld [vmem:[%s3 + $0xd0] sm:$0xff]
  %v572 = vld [vmem:[%s3 + $0xd8] sm:$0xff]
  %v573 = vld [vmem:[%s3 + $0xe0] sm:$0xff]
  %v574 = vld [vmem:[%s3 + $0xe8] sm:$0xff]
  %v575 = vld [vmem:[%s3 + $0xf0] sm:$0xff]
  %v576 = vld [vmem:[%s3 + $0xf8] sm:$0xff]
  %v577 = vld [vmem:[%s3 + $0x100] sm:$0xff]
  %v578 = vld [vmem:[%s3 + $0x108] sm:$0xff]
  %v579 = vld [vmem:[%s3 + $0x110] sm:$0xff]
  %v580 = vld [vmem:[%s3 + $0x118] sm:$0xff]
  %v581 = vld [vmem:[%s3 + $0x120] sm:$0xff]
  %v582 = vld [vmem:[%s3 + $0x128] sm:$0xff]
  %v583 = vld [vmem:[%s3 + $0x130] sm:$0xff]
  %v584 = vld [vmem:[%s3 + $0x138] sm:$0xff]
  %v585 = vld [vmem:[%s3 + $0x140] sm:$0xff]
  %v586 = vld [vmem:[%s3 + $0x148] sm:$0xff]
  %v587 = vld [vmem:[%s3 + $0x150] sm:$0xff]
  %v588 = vld [vmem:[%s3 + $0x158] sm:$0xff]
  %v589 = vld [vmem:[%s3 + $0x160] sm:$0xff]
  %v590 = vld [vmem:[%s3 + $0x168] sm:$0xff]
  %v591 = vld [vmem:[%s3 + $0x170] sm:$0xff]
  %v592 = vld [vmem:[%s3 + $0x178] sm:$0xff]
  %v593 = vld [vmem:[%s3 + $0x180] sm:$0xff]
  %v594 = vld [vmem:[%s3 + $0x188] sm:$0xff]
  %v595 = vld [vmem:[%s3 + $0x190] sm:$0xff]
  %v596 = vld [vmem:[%s3 + $0x198] sm:$0xff]
  %v597 = vld [vmem:[%s3 + $0x1a0] sm:$0xff]
  %v598 = vld [vmem:[%s3 + $0x1a8] sm:$0xff]
  %v599 = vld [vmem:[%s3 + $0x1b0] sm:$0xff]
  %v600 = vld [vmem:[%s3 + $0x1b8] sm:$0xff]
  %v601 = vld [vmem:[%s3 + $0x1c0] sm:$0xff]
  %v602 = vld [vmem:[%s3 + $0x1c8] sm:$0x77]
  %v603 = vunpack.c.l.bf16 %v545
  %v604 = vunpack.c.h.bf16 %v545
  %v605 = vunpack.c.l.bf16 %v546
  %v606 = vunpack.c.h.bf16 %v546
  %v607 = vunpack.c.l.bf16 %v547
  %v608 = vunpack.c.h.bf16 %v547
  %v609 = vunpack.c.l.bf16 %v548
  %v610 = vunpack.c.h.bf16 %v548
  %v611 = vunpack.c.l.bf16 %v549
  %v612 = vunpack.c.h.bf16 %v549
  %v613 = vunpack.c.l.bf16 %v550
  %v614 = vunpack.c.h.bf16 %v550
  %v615 = vunpack.c.l.bf16 %v551
  %v616 = vunpack.c.h.bf16 %v551
  %v617 = vunpack.c.l.bf16 %v552
  %v618 = vunpack.c.h.bf16 %v552
  %v619 = vunpack.c.l.bf16 %v553
  %v620 = vunpack.c.h.bf16 %v553
  %v621 = vunpack.c.l.bf16 %v554
  %v622 = vunpack.c.h.bf16 %v554
  %v623 = vunpack.c.l.bf16 %v555
  %v624 = vunpack.c.h.bf16 %v555
  %v625 = vunpack.c.l.bf16 %v556
  %v626 = vunpack.c.h.bf16 %v556
  %v627 = vunpack.c.l.bf16 %v557
  %v628 = vunpack.c.h.bf16 %v557
  %v629 = vunpack.c.l.bf16 %v558
  %v630 = vunpack.c.h.bf16 %v558
  %v631 = vunpack.c.l.bf16 %v559
  %v632 = vunpack.c.h.bf16 %v559
  %v633 = vunpack.c.l.bf16 %v560
  %v634 = vunpack.c.h.bf16 %v560
  %v635 = vunpack.c.l.bf16 %v561
  %v636 = vunpack.c.h.bf16 %v561
  %v637 = vunpack.c.l.bf16 %v562
  %v638 = vunpack.c.h.bf16 %v562
  %v639 = vunpack.c.l.bf16 %v563
  %v640 = vunpack.c.h.bf16 %v563
  %v641 = vunpack.c.l.bf16 %v564
  %v642 = vunpack.c.h.bf16 %v564
  %v643 = vunpack.c.l.bf16 %v565
  %v644 = vunpack.c.h.bf16 %v565
  %v645 = vunpack.c.l.bf16 %v566
  %v646 = vunpack.c.h.bf16 %v566
  %v647 = vunpack.c.l.bf16 %v567
  %v648 = vunpack.c.h.bf16 %v567
  %v649 = vunpack.c.l.bf16 %v568
  %v650 = vunpack.c.h.bf16 %v568
  %v651 = vunpack.c.l.bf16 %v569
  %v652 = vunpack.c.h.bf16 %v569
  %v653 = vunpack.c.l.bf16 %v570
  %v654 = vunpack.c.h.bf16 %v570
  %v655 = vunpack.c.l.bf16 %v571
  %v656 = vunpack.c.h.bf16 %v571
  %v657 = vunpack.c.l.bf16 %v572
  %v658 = vunpack.c.h.bf16 %v572
  %v659 = vunpack.c.l.bf16 %v573
  %v660 = vunpack.c.h.bf16 %v573
  %v661 = vunpack.c.l.bf16 %v574
  %v662 = vunpack.c.h.bf16 %v574
  %v663 = vunpack.c.l.bf16 %v575
  %v664 = vunpack.c.h.bf16 %v575
  %v665 = vunpack.c.l.bf16 %v576
  %v666 = vunpack.c.h.bf16 %v576
  %v667 = vunpack.c.l.bf16 %v577
  %v668 = vunpack.c.h.bf16 %v577
  %v669 = vunpack.c.l.bf16 %v578
  %v670 = vunpack.c.h.bf16 %v578
  %v671 = vunpack.c.l.bf16 %v579
  %v672 = vunpack.c.h.bf16 %v579
  %v673 = vunpack.c.l.bf16 %v580
  %v674 = vunpack.c.h.bf16 %v580
  %v675 = vunpack.c.l.bf16 %v581
  %v676 = vunpack.c.h.bf16 %v581
  %v677 = vunpack.c.l.bf16 %v582
  %v678 = vunpack.c.h.bf16 %v582
  %v679 = vunpack.c.l.bf16 %v583
  %v680 = vunpack.c.h.bf16 %v583
  %v681 = vunpack.c.l.bf16 %v584
  %v682 = vunpack.c.h.bf16 %v584
  %v683 = vunpack.c.l.bf16 %v585
  %v684 = vunpack.c.h.bf16 %v585
  %v685 = vunpack.c.l.bf16 %v586
  %v686 = vunpack.c.h.bf16 %v586
  %v687 = vunpack.c.l.bf16 %v587
  %v688 = vunpack.c.h.bf16 %v587
  %v689 = vunpack.c.l.bf16 %v588
  %v690 = vunpack.c.h.bf16 %v588
  %v691 = vunpack.c.l.bf16 %v589
  %v692 = vunpack.c.h.bf16 %v589
  %v693 = vunpack.c.l.bf16 %v590
  %v694 = vunpack.c.h.bf16 %v590
  %v695 = vunpack.c.l.bf16 %v591
  %v696 = vunpack.c.h.bf16 %v591
  %v697 = vunpack.c.l.bf16 %v592
  %v698 = vunpack.c.h.bf16 %v592
  %v699 = vunpack.c.l.bf16 %v593
  %v700 = vunpack.c.h.bf16 %v593
  %v701 = vunpack.c.l.bf16 %v594
  %v702 = vunpack.c.h.bf16 %v594
  %v703 = vunpack.c.l.bf16 %v595
  %v704 = vunpack.c.h.bf16 %v595
  %v705 = vunpack.c.l.bf16 %v596
  %v706 = vunpack.c.h.bf16 %v596
  %v707 = vunpack.c.l.bf16 %v597
  %v708 = vunpack.c.h.bf16 %v597
  %v709 = vunpack.c.l.bf16 %v598
  %v710 = vunpack.c.h.bf16 %v598
  %v711 = vunpack.c.l.bf16 %v599
  %v712 = vunpack.c.h.bf16 %v599
  %v713 = vunpack.c.l.bf16 %v600
  %v714 = vunpack.c.h.bf16 %v600
  %v715 = vunpack.c.l.bf16 %v601
  %v716 = vunpack.c.h.bf16 %v601
  %v717 = vunpack.c.l.bf16 %v602
  %v718 = vunpack.c.h.bf16 %v602
  %vm719 = vcmask 629760
  %v721 = vsel %vm719, %v544, 0
  %vm723 = vcmask 1044480
  %v725 = vsel %vm723, %v717, 0
  %v728 = vsel %vm723, %v718, 0
  %730 = vmatprep.subr.mxu0 %v604
  %731 = vmatpush1.msra.mxu0 %v603
  %732 = vmatprep.subr.mxu0 %v606
  %733 = vmatpush1.msra.mxu0 %v605
  %734 = vmatprep.subr.mxu0 %v608
  %735 = vmatpush1.msra.mxu0 %v607
  %736 = vmatprep.subr.mxu0 %v610
  %737 = vmatpush1.msra.mxu0 %v609
  %738 = vmatprep.subr.mxu0 %v612
  %739 = vmatpush1.msra.mxu0 %v611
  %740 = vmatprep.subr.mxu0 %v614
  %741 = vmatpush1.msra.mxu0 %v613
  %742 = vmatprep.subr.mxu0 %v616
  %743 = vmatpush1.msra.mxu0 %v615
  %744 = vmatprep.subr.mxu0 %v618
  %745 = vmatpush1.msra.mxu0 %v617
  %746 = vmatprep.subr.mxu0 %v620
  %747 = vmatpush1.msra.mxu0 %v619
  %748 = vmatprep.subr.mxu0 %v622
  %749 = vmatpush1.msra.mxu0 %v621
  %750 = vmatprep.subr.mxu0 %v624
  %751 = vmatpush1.msra.mxu0 %v623
  %752 = vmatprep.subr.mxu0 %v626
  %753 = vmatpush1.msra.mxu0 %v625
  %754 = vmatprep.subr.mxu0 %v628
  %755 = vmatpush1.msra.mxu0 %v627
  %756 = vmatprep.subr.mxu0 %v630
  %757 = vmatpush1.msra.mxu0 %v629
  %758 = vmatprep.subr.mxu0 %v632
  %759 = vmatpush1.msra.mxu0 %v631
  %760 = vmatprep.subr.mxu0 %v634
  %761 = vmatpush1.msra.mxu0 %v633
  %762 = vmatprep.subr.mxu0 %v636
  %763 = vmatpush1.msra.mxu0 %v635
  %764 = vmatprep.subr.mxu0 %v638
  %765 = vmatpush1.msra.mxu0 %v637
  %766 = vmatprep.subr.mxu0 %v640
  %767 = vmatpush1.msra.mxu0 %v639
  %768 = vmatprep.subr.mxu0 %v642
  %769 = vmatpush1.msra.mxu0 %v641
  %770 = vmatprep.subr.mxu0 %v644
  %771 = vmatpush1.msra.mxu0 %v643
  %772 = vmatprep.subr.mxu0 %v646
  %773 = vmatpush1.msra.mxu0 %v645
  %774 = vmatprep.subr.mxu0 %v648
  %775 = vmatpush1.msra.mxu0 %v647
  %776 = vmatprep.subr.mxu0 %v650
  %777 = vmatpush1.msra.mxu0 %v649
  %778 = vmatprep.subr.mxu0 %v652
  %779 = vmatpush1.msra.mxu0 %v651
  %780 = vmatprep.subr.mxu0 %v654
  %781 = vmatpush1.msra.mxu0 %v653
  %782 = vmatprep.subr.mxu0 %v656
  %783 = vmatpush1.msra.mxu0 %v655
  %784 = vmatprep.subr.mxu0 %v658
  %785 = vmatpush1.msra.mxu0 %v657
  %786 = vmatprep.subr.mxu0 %v660
  %787 = vmatpush1.msra.mxu0 %v659
  %788 = vmatprep.subr.mxu0 %v662
  %789 = vmatpush1.msra.mxu0 %v661
  %790 = vmatprep.subr.mxu0 %v664
  %791 = vmatpush1.msra.mxu0 %v663
  %792 = vmatprep.subr.mxu0 %v666
  %793 = vmatpush1.msra.mxu0 %v665
  %794 = vmatprep.mubr.f32.mxu0 %v542
  %795 = vmatmul.mubr.f32.gmra.mrb[0].mxu0 %v541
  %v796 = vpop.f32.mrb[0].mxu0
  %v797 = vadd.f32 0.0, %v796
  %v798 = vpop.f32.mrb[0].mxu0
  %v799 = vadd.f32 0.0, %v798
  %800 = vdwg.mxu0
  %801 = vmatprep.subr.mxu0 %v668
  %802 = vmatpush1.msra.mxu0 %v667
  %803 = vmatprep.subr.mxu0 %v670
  %804 = vmatpush1.msra.mxu0 %v669
  %805 = vmatprep.subr.mxu0 %v672
  %806 = vmatpush1.msra.mxu0 %v671
  %807 = vmatprep.subr.mxu0 %v674
  %808 = vmatpush1.msra.mxu0 %v673
  %809 = vmatprep.subr.mxu0 %v676
  %810 = vmatpush1.msra.mxu0 %v675
  %811 = vmatprep.subr.mxu0 %v678
  %812 = vmatpush1.msra.mxu0 %v677
  %813 = vmatprep.subr.mxu0 %v680
  %814 = vmatpush1.msra.mxu0 %v679
  %815 = vmatprep.subr.mxu0 %v682
  %816 = vmatpush1.msra.mxu0 %v681
  %817 = vmatprep.subr.mxu0 %v684
  %818 = vmatpush1.msra.mxu0 %v683
  %819 = vmatprep.subr.mxu0 %v686
  %820 = vmatpush1.msra.mxu0 %v685
  %821 = vmatprep.subr.mxu0 %v688
  %822 = vmatpush1.msra.mxu0 %v687
  %823 = vmatprep.subr.mxu0 %v690
  %824 = vmatpush1.msra.mxu0 %v689
  %825 = vmatprep.subr.mxu0 %v692
  %826 = vmatpush1.msra.mxu0 %v691
  %827 = vmatprep.subr.mxu0 %v694
  %828 = vmatpush1.msra.mxu0 %v693
  %829 = vmatprep.subr.mxu0 %v696
  %830 = vmatpush1.msra.mxu0 %v695
  %831 = vmatprep.subr.mxu0 %v698
  %832 = vmatpush1.msra.mxu0 %v697
  %833 = vmatprep.subr.mxu0 %v700
  %834 = vmatpush1.msra.mxu0 %v699
  %835 = vmatprep.subr.mxu0 %v702
  %836 = vmatpush1.msra.mxu0 %v701
  %837 = vmatprep.subr.mxu0 %v704
  %838 = vmatpush1.msra.mxu0 %v703
  %839 = vmatprep.subr.mxu0 %v706
  %840 = vmatpush1.msra.mxu0 %v705
  %841 = vmatprep.subr.mxu0 %v708
  %842 = vmatpush1.msra.mxu0 %v707
  %843 = vmatprep.subr.mxu0 %v710
  %844 = vmatpush1.msra.mxu0 %v709
  %845 = vmatprep.subr.mxu0 %v712
  %846 = vmatpush1.msra.mxu0 %v711
  %847 = vmatprep.subr.mxu0 %v714
  %848 = vmatpush1.msra.mxu0 %v713
  %849 = vmatprep.subr.mxu0 %v716
  %850 = vmatpush1.msra.mxu0 %v715
  %851 = vmatprep.subr.mxu0 %v728
  %852 = vmatpush1.msra.mxu0 %v725
  %853 = vmatprep.subr.mxu0 0.0
  %854 = vmatpush1.msra.mxu0 0.0
  %855 = vmatprep.subr.mxu0 0.0
  %856 = vmatpush1.msra.mxu0 0.0
  %857 = vmatprep.subr.mxu0 0.0
  %858 = vmatpush1.msra.mxu0 0.0
  %859 = vmatprep.subr.mxu0 0.0
  %860 = vmatpush1.msra.mxu0 0.0
  %861 = vmatprep.subr.mxu0 0.0
  %862 = vmatpush1.msra.mxu0 0.0
  %863 = vmatprep.subr.mxu0 0.0
  %864 = vmatpush1.msra.mxu0 0.0
  %865 = vmatprep.mubr.f32.mxu0 %v721
  %866 = vmatmul.mubr.f32.gmra.mrb[0].mxu0 %v543
  %v867 = vpop.f32.mrb[0].mxu0
  %v868 = vadd.f32 %v797, %v867
  %v869 = vpop.f32.mrb[0].mxu0
  %v870 = vadd.f32 %v799, %v869
  %871 = vdwg.mxu0
  %872 = vst [vmem:[#allocation4] sm:$0x3f] %v868
  %vm873 = vcmask 13312
  %874 = vst.msk [vmem:[#allocation4 + $0x8] sm:$0x3f] %vm873, %v870
  %v875 = vld [vmem:[#allocation4] sm:$0x3f]
  %vm876 = vcmask 799744
  %877 = vst.msk [vmem:[#allocation5] sm:$0x3f] %vm876, %v875
  %v878 = vld [vmem:[#allocation4] sm:$0x3f]
  %880 = vrot.lane.b32.xlu0 %v878, 127
  %v881 = vpop.permute.xlu0 %880
  %883 = vst.msk [vmem:[#allocation5 + $0x6] sm:$0x3f] %vm876, %v881
  %v884 = vld [vmem:[#allocation4] sm:$0x3f]
  %886 = vrot.lane.b32.xlu0 %v884, 126
  %v887 = vpop.permute.xlu0 %886
  %889 = vst.msk [vmem:[#allocation5 + $0xc] sm:$0x3f] %vm876, %v887
  %v890 = vld [vmem:[#allocation4] sm:$0x3f]
  %892 = vrot.lane.b32.xlu0 %v890, 125
  %v893 = vpop.permute.xlu0 %892
  %895 = vst.msk [vmem:[#allocation5 + $0x12] sm:$0x3f] %vm876, %v893
  %v896 = vld [vmem:[#allocation4] sm:$0x3f]
  %898 = vrot.lane.b32.xlu0 %v896, 124
  %v899 = vpop.permute.xlu0 %898
  %901 = vst.msk [vmem:[#allocation5 + $0x18] sm:$0x3f] %vm876, %v899
  %v902 = vld [vmem:[#allocation4] sm:$0x3f]
  %904 = vrot.lane.b32.xlu0 %v902, 121
  %v905 = vpop.permute.xlu0 %904
  %907 = vst.msk [vmem:[#allocation5 + $0x1e] sm:$0x3f] %vm876, %v905
  %v908 = vld [vmem:[#allocation4] sm:$0x3f]
  %910 = vrot.lane.b32.xlu0 %v908, 120
  %v911 = vpop.permute.xlu0 %910
  %913 = vst.msk [vmem:[#allocation5 + $0x24] sm:$0x3f] %vm876, %v911
  %v914 = vld [vmem:[#allocation4] sm:$0x3f]
  %916 = vrot.lane.b32.xlu0 %v914, 119
  %v917 = vpop.permute.xlu0 %916
  %919 = vst.msk [vmem:[#allocation5 + $0x2a] sm:$0x3f] %vm876, %v917
  %v920 = vld [vmem:[#allocation4] sm:$0x3f]
  %922 = vrot.lane.b32.xlu0 %v920, 118
  %v923 = vpop.permute.xlu0 %922
  %925 = vst.msk [vmem:[#allocation5 + $0x30] sm:$0x3f] %vm876, %v923
  %v926 = vld [vmem:[#allocation4] sm:$0x3f]
  %928 = vrot.lane.b32.xlu0 %v926, 117
  %v929 = vpop.permute.xlu0 %928
  %931 = vst.msk [vmem:[#allocation5 + $0x36] sm:$0x3f] %vm876, %v929
  %v932 = vld [vmem:[#allocation4] sm:$0x3f]
  %934 = vrot.lane.b32.xlu0 %v932, 114
  %v935 = vpop.permute.xlu0 %934
  %937 = vst.msk [vmem:[#allocation5 + $0x3c] sm:$0x3f] %vm876, %v935
  %v938 = vld [vmem:[#allocation4] sm:$0x3f]
  %940 = vrot.lane.b32.xlu0 %v938, 113
  %v941 = vpop.permute.xlu0 %940
  %943 = vst.msk [vmem:[#allocation5 + $0x42] sm:$0x3f] %vm876, %v941
  %v944 = vld [vmem:[#allocation4] sm:$0x3f]
  %946 = vrot.lane.b32.xlu0 %v944, 112
  %v947 = vpop.permute.xlu0 %946
  %949 = vst.msk [vmem:[#allocation5 + $0x48] sm:$0x3f] %vm876, %v947
  %v950 = vld [vmem:[#allocation4] sm:$0x3f]
  %952 = vrot.lane.b32.xlu0 %v950, 111
  %v953 = vpop.permute.xlu0 %952
  %955 = vst.msk [vmem:[#allocation5 + $0x4e] sm:$0x3f] %vm876, %v953
  %v956 = vld [vmem:[#allocation4] sm:$0x3f]
  %958 = vrot.lane.b32.xlu0 %v956, 110
  %v959 = vpop.permute.xlu0 %958
  %961 = vst.msk [vmem:[#allocation5 + $0x54] sm:$0x3f] %vm876, %v959
  %v962 = vld [vmem:[#allocation4] sm:$0x3f]
  %964 = vrot.lane.b32.xlu0 %v962, 107
  %v965 = vpop.permute.xlu0 %964
  %967 = vst.msk [vmem:[#allocation5 + $0x5a] sm:$0x3f] %vm876, %v965
  %v968 = vld [vmem:[#allocation4] sm:$0x3f]
  %970 = vrot.lane.b32.xlu0 %v968, 106
  %v971 = vpop.permute.xlu0 %970
  %973 = vst.msk [vmem:[#allocation5 + $0x60] sm:$0x3f] %vm876, %v971
  %v974 = vld [vmem:[#allocation4] sm:$0x3f]
  %976 = vrot.lane.b32.xlu0 %v974, 105
  %v977 = vpop.permute.xlu0 %976
  %979 = vst.msk [vmem:[#allocation5 + $0x66] sm:$0x3f] %vm876, %v977
  %v980 = vld [vmem:[#allocation4] sm:$0x3f]
  %982 = vrot.lane.b32.xlu0 %v980, 104
  %v983 = vpop.permute.xlu0 %982
  %985 = vst.msk [vmem:[#allocation5 + $0x6c] sm:$0x3f] %vm876, %v983
  %v986 = vld [vmem:[#allocation4] sm:$0x3f]
  %988 = vrot.lane.b32.xlu0 %v986, 103
  %v989 = vpop.permute.xlu0 %988
  %991 = vst.msk [vmem:[#allocation5 + $0x72] sm:$0x3f] %vm876, %v989
  %v992 = vld [vmem:[#allocation4] sm:$0x3f]
  %994 = vrot.lane.b32.xlu0 %v992, 100
  %v995 = vpop.permute.xlu0 %994
  %997 = vst.msk [vmem:[#allocation5 + $0x78] sm:$0x3f] %vm876, %v995
  %v998 = vld [vmem:[#allocation4] sm:$0x3f]
  %1000 = vrot.lane.b32.xlu0 %v998, 99
  %v1001 = vpop.permute.xlu0 %1000
  %1003 = vst.msk [vmem:[#allocation5 + $0x7e] sm:$0x3f] %vm876, %v1001
  %v1004 = vld [vmem:[#allocation4] sm:$0x3f]
  %1006 = vrot.lane.b32.xlu0 %v1004, 98
  %v1007 = vpop.permute.xlu0 %1006
  %1009 = vst.msk [vmem:[#allocation5 + $0x84] sm:$0x3f] %vm876, %v1007
  %v1010 = vld [vmem:[#allocation4] sm:$0x3f]
  %v1011 = vld [vmem:[#allocation4 + $0x8] sm:$0x3f]
  %1014 = vrot.lane.b32.xlu0 %v1010, 97
  %v1015 = vpop.permute.xlu0 %1014
  %1016 = vrot.lane.b32.xlu0 %v1011, 97
  %v1017 = vpop.permute.xlu0 %1016
  %vm1018 = vcmask 793600
  %v1019 = vsel %vm1018, %v1015, %v1017
  %1021 = vst.msk [vmem:[#allocation5 + $0x8a] sm:$0x3f] %vm876, %v1019
  %v1022 = vld [vmem:[#allocation4] sm:$0x3f]
  %v1023 = vld [vmem:[#allocation4 + $0x8] sm:$0x3f]
  %1026 = vrot.lane.b32.xlu0 %v1022, 96
  %v1027 = vpop.permute.xlu0 %1026
  %1028 = vrot.lane.b32.xlu0 %v1023, 96
  %v1029 = vpop.permute.xlu0 %1028
  %v1030 = vsel %vm229, %v1027, %v1029
  %1032 = vst.msk [vmem:[#allocation5 + $0x90] sm:$0x3f] %vm876, %v1030
  %v1033 = vld [vmem:[%s4] sm:$0xff]
  %v1034 = vld [vmem:[%s4 + $0x8] sm:$0xff]
  %v1035 = vld [vmem:[%s4 + $0x10] sm:$0xff]
  %v1036 = vld [vmem:[%s4 + $0x18] sm:$0xff]
  %v1037 = vld [vmem:[#allocation5] sm:$0xff]
  %v1038 = vld [vmem:[#allocation5 + $0x8] sm:$0xff]
  %v1039 = vld [vmem:[#allocation5 + $0x10] sm:$0xff]
  %v1040 = vld [vmem:[#allocation5 + $0x18] sm:$0xff]
  %v1041 = vld [vmem:[#allocation5 + $0x20] sm:$0xff]
  %v1042 = vld [vmem:[#allocation5 + $0x28] sm:$0xff]
  %v1043 = vld [vmem:[#allocation5 + $0x30] sm:$0xff]
  %v1044 = vld [vmem:[#allocation5 + $0x38] sm:$0xff]
  %v1045 = vld [vmem:[#allocation5 + $0x40] sm:$0xff]
  %v1046 = vld [vmem:[#allocation5 + $0x48] sm:$0xff]
  %v1047 = vld [vmem:[#allocation5 + $0x50] sm:$0xff]
  %v1048 = vld [vmem:[#allocation5 + $0x58] sm:$0xff]
  %v1049 = vld [vmem:[#allocation5 + $0x60] sm:$0xff]
  %v1050 = vld [vmem:[#allocation5 + $0x68] sm:$0xff]
  %v1051 = vld [vmem:[#allocation5 + $0x70] sm:$0xff]
  %v1052 = vld [vmem:[#allocation5 + $0x78] sm:$0xff]
  %v1053 = vld [vmem:[#allocation5 + $0x80] sm:$0xff]
  %v1054 = vld [vmem:[#allocation5 + $0x88] sm:$0xff]
  %v1055 = vld [vmem:[#allocation5 + $0x90] sm:$0x3f]
  %v1056 = vld [vmem:[%s5] sm:$0xff]
  %v1057 = vld [vmem:[%s5 + $0x8] sm:$0xff]
  %1059 = vset.pattern.permute.xlu0 0
  %1060 = vperm.xlu0 %1059, %v1056
  %v1061 = vpop.permute.xlu0 %1060
  %1064 = vset.pattern.permute.xlu0 0
  %1065 = vperm.xlu0 %1064, %v1057
  %v1066 = vpop.permute.xlu0 %1065
  %vm1068 = vcmask 179200
  %v1070 = vsel %vm1068, %v1034, 0
  %v1073 = vsel %vm1068, %v1036, 0
  %vm1075 = vcmask 1045504
  %v1077 = vsel %vm1075, %v1055, 0
  %1079 = vmatprep.subr.mxu0 0.0
  %1080 = vmatpush1.msra.mxu0 %v1037
  %1081 = vmatprep.subr.mxu0 0.0
  %1082 = vmatpush1.msra.mxu0 %v1038
  %1083 = vmatprep.subr.mxu0 0.0
  %1084 = vmatpush1.msra.mxu0 %v1039
  %1085 = vmatprep.subr.mxu0 0.0
  %1086 = vmatpush1.msra.mxu0 %v1040
  %1087 = vmatprep.subr.mxu0 0.0
  %1088 = vmatpush1.msra.mxu0 %v1041
  %1089 = vmatprep.subr.mxu0 0.0
  %1090 = vmatpush1.msra.mxu0 %v1042
  %1091 = vmatprep.subr.mxu0 0.0
  %1092 = vmatpush1.msra.mxu0 %v1043
  %1093 = vmatprep.subr.mxu0 0.0
  %1094 = vmatpush1.msra.mxu0 %v1044
  %1095 = vmatprep.subr.mxu0 0.0
  %1096 = vmatpush1.msra.mxu0 %v1045
  %1097 = vmatprep.subr.mxu0 0.0
  %1098 = vmatpush1.msra.mxu0 %v1046
  %1099 = vmatprep.subr.mxu0 0.0
  %1100 = vmatpush1.msra.mxu0 %v1047
  %1101 = vmatprep.subr.mxu0 0.0
  %1102 = vmatpush1.msra.mxu0 %v1048
  %1103 = vmatprep.subr.mxu0 0.0
  %1104 = vmatpush1.msra.mxu0 %v1049
  %1105 = vmatprep.subr.mxu0 0.0
  %1106 = vmatpush1.msra.mxu0 %v1050
  %1107 = vmatprep.subr.mxu0 0.0
  %1108 = vmatpush1.msra.mxu0 %v1051
  %1109 = vmatprep.subr.mxu0 0.0
  %1110 = vmatpush1.msra.mxu0 %v1052
  %1111 = vmatprep.subr.mxu0 0.0
  %1112 = vmatpush1.msra.mxu0 %v1053
  %1113 = vmatprep.subr.mxu0 0.0
  %1114 = vmatpush1.msra.mxu0 %v1054
  %1115 = vmatprep.subr.mxu0 0.0
  %1116 = vmatpush1.msra.mxu0 %v1077
  %1117 = vmatprep.subr.mxu0 0.0
  %1118 = vmatpush1.msra.mxu0 0.0
  %1119 = vmatprep.subr.mxu0 0.0
  %1120 = vmatpush1.msra.mxu0 0.0
  %1121 = vmatprep.subr.mxu0 0.0
  %1122 = vmatpush1.msra.mxu0 0.0
  %1123 = vmatprep.subr.mxu0 0.0
  %1124 = vmatpush1.msra.mxu0 0.0
  %1125 = vmatprep.subr.mxu0 0.0
  %1126 = vmatpush1.msra.mxu0 0.0
  %1127 = vmatprep.subr.mxu0 0.0
  %1128 = vmatpush1.msra.mxu0 0.0
  %1129 = vmatprep.subr.mxu0 0.0
  %1130 = vmatpush1.msra.mxu0 0.0
  %1131 = vmatprep.subr.mxu0 0.0
  %1132 = vmatpush1.msra.mxu0 0.0
  %1133 = vmatprep.subr.mxu0 0.0
  %1134 = vmatpush1.msra.mxu0 0.0
  %1135 = vmatprep.subr.mxu0 0.0
  %1136 = vmatpush1.msra.mxu0 0.0
  %1137 = vmatprep.subr.mxu0 0.0
  %1138 = vmatpush1.msra.mxu0 0.0
  %1139 = vmatprep.subr.mxu0 0.0
  %1140 = vmatpush1.msra.mxu0 0.0
  %1141 = vmatprep.subr.mxu0 0.0
  %1142 = vmatpush1.msra.mxu0 0.0
  %1143 = vmatprep.mubr.f32.mxu0 %v1070
  %1144 = vmatmul.mubr.f32.gmra.mrb[0].mxu0 %v1033
  %v1145 = vpop.f32.mrb[0].mxu0
  %v1146 = vadd.f32 %v1061, %v1145
  %v1147 = vpop.f32.mrb[0].mxu0
  %1148 = vmatprep.mubr.f32.mxu0 %v1073
  %1149 = vmatmul.mubr.f32.gmra.mrb[0].mxu0 %v1035
  %v1150 = vpop.f32.mrb[0].mxu0
  %v1151 = vadd.f32 %v1066, %v1150
  %v1152 = vpop.f32.mrb[0].mxu0
  %1153 = vdwg.mxu0
  %vm1154 = vcmask 801792
  %1155 = vst.msk [vmem:[#allocation6] sm:$0xff] %vm1154, %v1146
  %1156 = vst.msk [vmem:[#allocation6 + $0x8] sm:$0xff] %vm1154, %v1151
  %v1157 = vld [vmem:[#allocation6] sm:$0xff]
  %v1158 = vld [vmem:[#allocation6 + $0x8] sm:$0xff]
  %1161 = vrot.lane.b32.xlu0 %v1157, 127
  %v1162 = vpop.permute.xlu0 %1161
  %1163 = vrot.lane.b32.xlu0 %v1158, 127
  %v1164 = vpop.permute.xlu0 %1163
  %v1167 = vmax.f32 %v1157, %v1162
  %v1168 = vmax.f32 %v1158, %v1164
  %1171 = vrot.lane.b32.xlu0 %v1167, 121
  %v1172 = vpop.permute.xlu0 %1171
  %1173 = vrot.lane.b32.xlu0 %v1168, 121
  %v1174 = vpop.permute.xlu0 %1173
  %v1177 = vmax.f32 %v1167, %v1172
  %v1178 = vmax.f32 %v1168, %v1174
  %vm1179 = vcmask 7168
  %1180 = vst.msk [vmem:[#allocation7] sm:$0xff] %vm1179, %v1177
  %1181 = vst.msk [vmem:[#allocation7 + $0x8] sm:$0xff] %vm1179, %v1178
  %v1182 = vld [vmem:[#allocation6] sm:$0xff]
  %v1183 = vld [vmem:[#allocation6 + $0x8] sm:$0xff]
  %1186 = vrot.lane.b32.xlu0 %v1182, 127
  %v1187 = vpop.permute.xlu0 %1186
  %1188 = vrot.lane.b32.xlu0 %v1183, 127
  %v1189 = vpop.permute.xlu0 %1188
  %v1192 = vmax.f32 %v1182, %v1187
  %v1193 = vmax.f32 %v1183, %v1189
  %1196 = vrot.lane.b32.xlu0 %v1192, 121
  %v1197 = vpop.permute.xlu0 %1196
  %1198 = vrot.lane.b32.xlu0 %v1193, 121
  %v1199 = vpop.permute.xlu0 %1198
  %v1202 = vmax.f32 %v1192, %v1197
  %v1203 = vmax.f32 %v1193, %v1199
  %1206 = vrot.lane.b32.xlu0 %v1202, 80
  %v1207 = vpop.permute.xlu0 %1206
  %1208 = vrot.lane.b32.xlu0 %v1203, 80
  %v1209 = vpop.permute.xlu0 %1208
  %vm1212 = vcmask 15368
  %1213 = vst.msk [vmem:[#allocation7] sm:$0xff] %vm1212, %v1207
  %1214 = vst.msk [vmem:[#allocation7 + $0x8] sm:$0xff] %vm1212, %v1209
  %v1215 = vld [vmem:[%s6] sm:$0xff]
  %v1216 = vld [vmem:[%s6 + $0x8] sm:$0xff]
  %v1217 = vld [vmem:[%s6 + $0x10] sm:$0xff]
  %v1218 = vld [vmem:[%s6 + $0x18] sm:$0xff]
  %v1219 = vld [vmem:[%s6 + $0x20] sm:$0xff]
  %v1220 = vld [vmem:[%s6 + $0x28] sm:$0xff]
  %v1221 = vld [vmem:[%s6 + $0x30] sm:$0xff]
  %v1222 = vld [vmem:[%s6 + $0x38] sm:$0xff]
  %v1223 = vld [vmem:[%s6 + $0x40] sm:$0xff]
  %v1224 = vld [vmem:[%s6 + $0x48] sm:$0xff]
  %v1225 = vld [vmem:[%s6 + $0x50] sm:$0xff]
  %v1226 = vld [vmem:[%s6 + $0x58] sm:$0xff]
  %v1227 = vld [vmem:[%s6 + $0x60] sm:$0xff]
  %v1228 = vld [vmem:[%s6 + $0x68] sm:$0xff]
  %v1229 = vld [vmem:[%s6 + $0x70] sm:$0xff]
  %v1230 = vld [vmem:[#allocation7] sm:$0xff]
  %v1231 = vld [vmem:[#allocation7 + $0x8] sm:$0xff]
  %v1232 = vld [vmem:[%s7] sm:$0xff]
  %v1233 = vld [vmem:[%s7 + $0x8] sm:$0xff]
  %v1234 = vld [vmem:[%s7 + $0x10] sm:$0xff]
  %v1235 = vld [vmem:[%s7 + $0x18] sm:$0xff]
  %v1236 = vld [vmem:[%s7 + $0x20] sm:$0xff]
  %v1237 = vld [vmem:[%s7 + $0x28] sm:$0xff]
  %v1238 = vld [vmem:[%s7 + $0x30] sm:$0xff]
  %v1239 = vld [vmem:[%s7 + $0x38] sm:$0xff]
  %v1240 = vld [vmem:[%s7 + $0x40] sm:$0xff]
  %v1241 = vld [vmem:[%s7 + $0x48] sm:$0xff]
  %v1242 = vld [vmem:[%s7 + $0x50] sm:$0xff]
  %v1243 = vld [vmem:[%s7 + $0x58] sm:$0xff]
  %v1244 = vld [vmem:[%s7 + $0x60] sm:$0xff]
  %v1245 = vld [vmem:[%s7 + $0x68] sm:$0xff]
  %v1246 = vld [vmem:[%s7 + $0x70] sm:$0xff]
  %1248 = vset.pattern.permute.xlu0 0
  %1249 = vperm.xlu0 %1248, %v1232
  %v1250 = vpop.permute.xlu0 %1249
  %1253 = vset.pattern.permute.xlu0 0
  %1254 = vperm.xlu0 %1253, %v1233
  %v1255 = vpop.permute.xlu0 %1254
  %1258 = vset.pattern.permute.xlu0 0
  %1259 = vperm.xlu0 %1258, %v1234
  %v1260 = vpop.permute.xlu0 %1259
  %1263 = vset.pattern.permute.xlu0 0
  %1264 = vperm.xlu0 %1263, %v1235
  %v1265 = vpop.permute.xlu0 %1264
  %1268 = vset.pattern.permute.xlu0 0
  %1269 = vperm.xlu0 %1268, %v1236
  %v1270 = vpop.permute.xlu0 %1269
  %1273 = vset.pattern.permute.xlu0 0
  %1274 = vperm.xlu0 %1273, %v1237
  %v1275 = vpop.permute.xlu0 %1274
  %1278 = vset.pattern.permute.xlu0 0
  %1279 = vperm.xlu0 %1278, %v1238
  %v1280 = vpop.permute.xlu0 %1279
  %1283 = vset.pattern.permute.xlu0 0
  %1284 = vperm.xlu0 %1283, %v1239
  %v1285 = vpop.permute.xlu0 %1284
  %1288 = vset.pattern.permute.xlu0 0
  %1289 = vperm.xlu0 %1288, %v1240
  %v1290 = vpop.permute.xlu0 %1289
  %1293 = vset.pattern.permute.xlu0 0
  %1294 = vperm.xlu0 %1293, %v1241
  %v1295 = vpop.permute.xlu0 %1294
  %1298 = vset.pattern.permute.xlu0 0
  %1299 = vperm.xlu0 %1298, %v1242
  %v1300 = vpop.permute.xlu0 %1299
  %1303 = vset.pattern.permute.xlu0 0
  %1304 = vperm.xlu0 %1303, %v1243
  %v1305 = vpop.permute.xlu0 %1304
  %1308 = vset.pattern.permute.xlu0 0
  %1309 = vperm.xlu0 %1308, %v1244
  %v1310 = vpop.permute.xlu0 %1309
  %1313 = vset.pattern.permute.xlu0 0
  %1314 = vperm.xlu0 %1313, %v1245
  %v1315 = vpop.permute.xlu0 %1314
  %1318 = vset.pattern.permute.xlu0 0
  %1319 = vperm.xlu0 %1318, %v1246
  %v1320 = vpop.permute.xlu0 %1319
  %vm1322 = vcmask 130048
  %v1324 = vsel %vm1322, %v1215, 0
  %v1327 = vsel %vm1322, %v1216, 0
  %v1330 = vsel %vm1322, %v1217, 0
  %v1333 = vsel %vm1322, %v1218, 0
  %v1336 = vsel %vm1322, %v1219, 0
  %v1339 = vsel %vm1322, %v1220, 0
  %v1342 = vsel %vm1322, %v1221, 0
  %v1345 = vsel %vm1322, %v1222, 0
  %v1348 = vsel %vm1322, %v1223, 0
  %v1351 = vsel %vm1322, %v1224, 0
  %v1354 = vsel %vm1322, %v1225, 0
  %v1357 = vsel %vm1322, %v1226, 0
  %v1360 = vsel %vm1322, %v1227, 0
  %v1363 = vsel %vm1322, %v1228, 0
  %v1366 = vsel %vm1322, %v1229, 0
  %1368 = vmatprep.subr.mxu0 0.0
  %1369 = vmatpush1.msra.mxu0 %v1230
  %1370 = vmatprep.subr.mxu0 0.0
  %1371 = vmatpush1.msra.mxu0 %v1231
  %1372 = vmatprep.subr.mxu0 0.0
  %1373 = vmatpush1.msra.mxu0 0.0
  %1374 = vmatprep.subr.mxu0 0.0
  %1375 = vmatpush1.msra.mxu0 0.0
  %1376 = vmatprep.subr.mxu0 0.0
  %1377 = vmatpush1.msra.mxu0 0.0
  %1378 = vmatprep.subr.mxu0 0.0
  %1379 = vmatpush1.msra.mxu0 0.0
  %1380 = vmatprep.subr.mxu0 0.0
  %1381 = vmatpush1.msra.mxu0 0.0
  %1382 = vmatprep.subr.mxu0 0.0
  %1383 = vmatpush1.msra.mxu0 0.0
  %1384 = vmatprep.subr.mxu0 0.0
  %1385 = vmatpush1.msra.mxu0 0.0
  %1386 = vmatprep.subr.mxu0 0.0
  %1387 = vmatpush1.msra.mxu0 0.0
  %1388 = vmatprep.subr.mxu0 0.0
  %1389 = vmatpush1.msra.mxu0 0.0
  %1390 = vmatprep.subr.mxu0 0.0
  %1391 = vmatpush1.msra.mxu0 0.0
  %1392 = vmatprep.subr.mxu0 0.0
  %1393 = vmatpush1.msra.mxu0 0.0
  %1394 = vmatprep.subr.mxu0 0.0
  %1395 = vmatpush1.msra.mxu0 0.0
  %1396 = vmatprep.subr.mxu0 0.0
  %1397 = vmatpush1.msra.mxu0 0.0
  %1398 = vmatprep.subr.mxu0 0.0
  %1399 = vmatpush1.msra.mxu0 0.0
  %1400 = vmatprep.subr.mxu0 0.0
  %1401 = vmatpush1.msra.mxu0 0.0
  %1402 = vmatprep.subr.mxu0 0.0
  %1403 = vmatpush1.msra.mxu0 0.0
  %1404 = vmatprep.subr.mxu0 0.0
  %1405 = vmatpush1.msra.mxu0 0.0
  %1406 = vmatprep.subr.mxu0 0.0
  %1407 = vmatpush1.msra.mxu0 0.0
  %1408 = vmatprep.subr.mxu0 0.0
  %1409 = vmatpush1.msra.mxu0 0.0
  %1410 = vmatprep.subr.mxu0 0.0
  %1411 = vmatpush1.msra.mxu0 0.0
  %1412 = vmatprep.subr.mxu0 0.0
  %1413 = vmatpush1.msra.mxu0 0.0
  %1414 = vmatprep.subr.mxu0 0.0
  %1415 = vmatpush1.msra.mxu0 0.0
  %1416 = vmatprep.subr.mxu0 0.0
  %1417 = vmatpush1.msra.mxu0 0.0
  %1418 = vmatprep.subr.mxu0 0.0
  %1419 = vmatpush1.msra.mxu0 0.0
  %1420 = vmatprep.subr.mxu0 0.0
  %1421 = vmatpush1.msra.mxu0 0.0
  %1422 = vmatprep.subr.mxu0 0.0
  %1423 = vmatpush1.msra.mxu0 0.0
  %1424 = vmatprep.subr.mxu0 0.0
  %1425 = vmatpush1.msra.mxu0 0.0
  %1426 = vmatprep.subr.mxu0 0.0
  %1427 = vmatpush1.msra.mxu0 0.0
  %1428 = vmatprep.subr.mxu0 0.0
  %1429 = vmatpush1.msra.mxu0 0.0
  %1430 = vmatprep.subr.mxu0 0.0
  %1431 = vmatpush1.msra.mxu0 0.0
  %1432 = vmatprep.mubr.f32.mxu0 0.0
  %1433 = vmatmul.mubr.f32.gmra.mrb[0].mxu0 %v1324
  %v1434 = vpop.f32.mrb[0].mxu0
  %v1435 = vadd.f32 %v1250, %v1434
  %v1436 = vpop.f32.mrb[0].mxu0
  %1437 = vmatprep.mubr.f32.mxu0 0.0
  %1438 = vmatmul.mubr.f32.gmra.mrb[0].mxu0 %v1327
  %v1439 = vpop.f32.mrb[0].mxu0
  %v1440 = vadd.f32 %v1255, %v1439
  %v1441 = vpop.f32.mrb[0].mxu0
  %1442 = vmatprep.mubr.f32.mxu0 0.0
  %1443 = vmatmul.mubr.f32.gmra.mrb[0].mxu0 %v1330
  %v1444 = vpop.f32.mrb[0].mxu0
  %v1445 = vadd.f32 %v1260, %v1444
  %v1446 = vpop.f32.mrb[0].mxu0
  %1447 = vmatprep.mubr.f32.mxu0 0.0
  %1448 = vmatmul.mubr.f32.gmra.mrb[0].mxu0 %v1333
  %v1449 = vpop.f32.mrb[0].mxu0
  %v1450 = vadd.f32 %v1265, %v1449
  %v1451 = vpop.f32.mrb[0].mxu0
  %1452 = vmatprep.mubr.f32.mxu0 0.0
  %1453 = vmatmul.mubr.f32.gmra.mrb[0].mxu0 %v1336
  %v1454 = vpop.f32.mrb[0].mxu0
  %v1455 = vadd.f32 %v1270, %v1454
  %v1456 = vpop.f32.mrb[0].mxu0
  %1457 = vmatprep.mubr.f32.mxu0 0.0
  %1458 = vmatmul.mubr.f32.gmra.mrb[0].mxu0 %v1339
  %v1459 = vpop.f32.mrb[0].mxu0
  %v1460 = vadd.f32 %v1275, %v1459
  %v1461 = vpop.f32.mrb[0].mxu0
  %1462 = vmatprep.mubr.f32.mxu0 0.0
  %1463 = vmatmul.mubr.f32.gmra.mrb[0].mxu0 %v1342
  %v1464 = vpop.f32.mrb[0].mxu0
  %v1465 = vadd.f32 %v1280, %v1464
  %v1466 = vpop.f32.mrb[0].mxu0
  %1467 = vmatprep.mubr.f32.mxu0 0.0
  %1468 = vmatmul.mubr.f32.gmra.mrb[0].mxu0 %v1345
  %v1469 = vpop.f32.mrb[0].mxu0
  %v1470 = vadd.f32 %v1285, %v1469
  %v1471 = vpop.f32.mrb[0].mxu0
  %1472 = vmatprep.mubr.f32.mxu0 0.0
  %1473 = vmatmul.mubr.f32.gmra.mrb[0].mxu0 %v1348
  %v1474 = vpop.f32.mrb[0].mxu0
  %v1475 = vadd.f32 %v1290, %v1474
  %v1476 = vpop.f32.mrb[0].mxu0
  %1477 = vmatprep.mubr.f32.mxu0 0.0
  %1478 = vmatmul.mubr.f32.gmra.mrb[0].mxu0 %v1351
  %v1479 = vpop.f32.mrb[0].mxu0
  %v1480 = vadd.f32 %v1295, %v1479
  %v1481 = vpop.f32.mrb[0].mxu0
  %1482 = vmatprep.mubr.f32.mxu0 0.0
  %1483 = vmatmul.mubr.f32.gmra.mrb[0].mxu0 %v1354
  %v1484 = vpop.f32.mrb[0].mxu0
  %v1485 = vadd.f32 %v1300, %v1484
  %v1486 = vpop.f32.mrb[0].mxu0
  %1487 = vmatprep.mubr.f32.mxu0 0.0
  %1488 = vmatmul.mubr.f32.gmra.mrb[0].mxu0 %v1357
  %v1489 = vpop.f32.mrb[0].mxu0
  %v1490 = vadd.f32 %v1305, %v1489
  %v1491 = vpop.f32.mrb[0].mxu0
  %1492 = vmatprep.mubr.f32.mxu0 0.0
  %1493 = vmatmul.mubr.f32.gmra.mrb[0].mxu0 %v1360
  %v1494 = vpop.f32.mrb[0].mxu0
  %v1495 = vadd.f32 %v1310, %v1494
  %v1496 = vpop.f32.mrb[0].mxu0
  %1497 = vmatprep.mubr.f32.mxu0 0.0
  %1498 = vmatmul.mubr.f32.gmra.mrb[0].mxu0 %v1363
  %v1499 = vpop.f32.mrb[0].mxu0
  %v1500 = vadd.f32 %v1315, %v1499
  %v1501 = vpop.f32.mrb[0].mxu0
  %1502 = vmatprep.mubr.f32.mxu0 0.0
  %1503 = vmatmul.mubr.f32.gmra.mrb[0].mxu0 %v1366
  %v1504 = vpop.f32.mrb[0].mxu0
  %v1505 = vadd.f32 %v1320, %v1504
  %v1506 = vpop.f32.mrb[0].mxu0
  %1507 = vdwg.mxu0
  %v1508 = vld [vmem:[%s8] sm:$0xff]
  %v1509 = vld [vmem:[%s8 + $0x8] sm:$0xff]
  %v1510 = vld [vmem:[%s8 + $0x10] sm:$0xff]
  %v1511 = vld [vmem:[%s8 + $0x18] sm:$0xff]
  %v1512 = vld [vmem:[%s8 + $0x20] sm:$0xff]
  %v1513 = vld [vmem:[%s8 + $0x28] sm:$0xff]
  %v1514 = vld [vmem:[%s8 + $0x30] sm:$0xff]
  %v1515 = vld [vmem:[%s8 + $0x38] sm:$0xff]
  %v1516 = vld [vmem:[%s8 + $0x40] sm:$0xff]
  %v1517 = vld [vmem:[%s8 + $0x48] sm:$0xff]
  %v1518 = vld [vmem:[%s8 + $0x50] sm:$0xf]
  %v1519 = vld [vmem:[%s9] sm:$0xff]
  %v1520 = vld [vmem:[%s9 + $0x8] sm:$0xff]
  %v1521 = vld [vmem:[%s9 + $0x10] sm:$0xff]
  %v1522 = vld [vmem:[%s9 + $0x18] sm:$0xff]
  %v1523 = vld [vmem:[%s9 + $0x20] sm:$0xff]
  %v1524 = vld [vmem:[%s9 + $0x28] sm:$0xff]
  %v1525 = vld [vmem:[%s9 + $0x30] sm:$0xff]
  %v1526 = vld [vmem:[%s9 + $0x38] sm:$0xff]
  %v1527 = vld [vmem:[%s9 + $0x40] sm:$0xff]
  %v1528 = vld [vmem:[%s9 + $0x48] sm:$0xff]
  %v1529 = vld [vmem:[%s9 + $0x50] sm:$0xf]
  %1531 = vset.pattern.permute.xlu0 0
  %1532 = vperm.xlu0 %1531, %v1519
  %v1533 = vpop.permute.xlu0 %1532
  %1536 = vset.pattern.permute.xlu0 0
  %1537 = vperm.xlu0 %1536, %v1520
  %v1538 = vpop.permute.xlu0 %1537
  %1541 = vset.pattern.permute.xlu0 0
  %1542 = vperm.xlu0 %1541, %v1521
  %v1543 = vpop.permute.xlu0 %1542
  %1546 = vset.pattern.permute.xlu0 0
  %1547 = vperm.xlu0 %1546, %v1522
  %v1548 = vpop.permute.xlu0 %1547
  %1551 = vset.pattern.permute.xlu0 0
  %1552 = vperm.xlu0 %1551, %v1523
  %v1553 = vpop.permute.xlu0 %1552
  %1556 = vset.pattern.permute.xlu0 0
  %1557 = vperm.xlu0 %1556, %v1524
  %v1558 = vpop.permute.xlu0 %1557
  %1561 = vset.pattern.permute.xlu0 0
  %1562 = vperm.xlu0 %1561, %v1525
  %v1563 = vpop.permute.xlu0 %1562
  %1566 = vset.pattern.permute.xlu0 0
  %1567 = vperm.xlu0 %1566, %v1526
  %v1568 = vpop.permute.xlu0 %1567
  %1571 = vset.pattern.permute.xlu0 0
  %1572 = vperm.xlu0 %1571, %v1527
  %v1573 = vpop.permute.xlu0 %1572
  %1576 = vset.pattern.permute.xlu0 0
  %1577 = vperm.xlu0 %1576, %v1528
  %v1578 = vpop.permute.xlu0 %1577
  %1581 = vset.pattern.permute.xlu0 0
  %1582 = vperm.xlu0 %1581, %v1529
  %v1583 = vpop.permute.xlu0 %1582
  %vm1585 = vcmask 982016
  %v1587 = vsel %vm1585, %v1508, 0
  %v1590 = vsel %vm1585, %v1509, 0
  %v1593 = vsel %vm1585, %v1510, 0
  %v1596 = vsel %vm1585, %v1511, 0
  %v1599 = vsel %vm1585, %v1512, 0
  %v1602 = vsel %vm1585, %v1513, 0
  %v1605 = vsel %vm1585, %v1514, 0
  %v1608 = vsel %vm1585, %v1515, 0
  %v1611 = vsel %vm1585, %v1516, 0
  %v1614 = vsel %vm1585, %v1517, 0
  %v1617 = vsel %vm1585, %v1518, 0
  %1619 = vmatprep.subr.mxu0 0.0
  %1620 = vmatpush1.msra.mxu0 %v1435
  %1621 = vmatprep.subr.mxu0 0.0
  %1622 = vmatpush1.msra.mxu0 %v1440
  %1623 = vmatprep.subr.mxu0 0.0
  %1624 = vmatpush1.msra.mxu0 %v1445
  %1625 = vmatprep.subr.mxu0 0.0
  %1626 = vmatpush1.msra.mxu0 %v1450
  %1627 = vmatprep.subr.mxu0 0.0
  %1628 = vmatpush1.msra.mxu0 %v1455
  %1629 = vmatprep.subr.mxu0 0.0
  %1630 = vmatpush1.msra.mxu0 %v1460
  %1631 = vmatprep.subr.mxu0 0.0
  %1632 = vmatpush1.msra.mxu0 %v1465
  %1633 = vmatprep.subr.mxu0 0.0
  %1634 = vmatpush1.msra.mxu0 %v1470
  %1635 = vmatprep.subr.mxu0 0.0
  %1636 = vmatpush1.msra.mxu0 %v1475
  %1637 = vmatprep.subr.mxu0 0.0
  %1638 = vmatpush1.msra.mxu0 %v1480
  %1639 = vmatprep.subr.mxu0 0.0
  %1640 = vmatpush1.msra.mxu0 %v1485
  %1641 = vmatprep.subr.mxu0 0.0
  %1642 = vmatpush1.msra.mxu0 %v1490
  %1643 = vmatprep.subr.mxu0 0.0
  %1644 = vmatpush1.msra.mxu0 %v1495
  %1645 = vmatprep.subr.mxu0 0.0
  %1646 = vmatpush1.msra.mxu0 %v1500
  %1647 = vmatprep.subr.mxu0 0.0
  %1648 = vmatpush1.msra.mxu0 %v1505
  %1649 = vmatprep.subr.mxu0 0.0
  %1650 = vmatpush1.msra.mxu0 0.0
  %1651 = vmatprep.subr.mxu0 0.0
  %1652 = vmatpush1.msra.mxu0 0.0
  %1653 = vmatprep.subr.mxu0 0.0
  %1654 = vmatpush1.msra.mxu0 0.0
  %1655 = vmatprep.subr.mxu0 0.0
  %1656 = vmatpush1.msra.mxu0 0.0
  %1657 = vmatprep.subr.mxu0 0.0
  %1658 = vmatpush1.msra.mxu0 0.0
  %1659 = vmatprep.subr.mxu0 0.0
  %1660 = vmatpush1.msra.mxu0 0.0
  %1661 = vmatprep.subr.mxu0 0.0
  %1662 = vmatpush1.msra.mxu0 0.0
  %1663 = vmatprep.subr.mxu0 0.0
  %1664 = vmatpush1.msra.mxu0 0.0
  %1665 = vmatprep.subr.mxu0 0.0
  %1666 = vmatpush1.msra.mxu0 0.0
  %1667 = vmatprep.subr.mxu0 0.0
  %1668 = vmatpush1.msra.mxu0 0.0
  %1669 = vmatprep.subr.mxu0 0.0
  %1670 = vmatpush1.msra.mxu0 0.0
  %1671 = vmatprep.subr.mxu0 0.0
  %1672 = vmatpush1.msra.mxu0 0.0
  %1673 = vmatprep.subr.mxu0 0.0
  %1674 = vmatpush1.msra.mxu0 0.0
  %1675 = vmatprep.subr.mxu0 0.0
  %1676 = vmatpush1.msra.mxu0 0.0
  %1677 = vmatprep.subr.mxu0 0.0
  %1678 = vmatpush1.msra.mxu0 0.0
  %1679 = vmatprep.subr.mxu0 0.0
  %1680 = vmatpush1.msra.mxu0 0.0
  %1681 = vmatprep.subr.mxu0 0.0
  %1682 = vmatpush1.msra.mxu0 0.0
  %1683 = vmatprep.mubr.f32.mxu0 0.0
  %1684 = vmatmul.mubr.f32.gmra.mrb[0].mxu0 %v1587
  %v1685 = vpop.f32.mrb[0].mxu0
  %v1686 = vadd.f32 %v1533, %v1685
  %v1687 = vpop.f32.mrb[0].mxu0
  %1688 = vmatprep.mubr.f32.mxu0 0.0
  %1689 = vmatmul.mubr.f32.gmra.mrb[0].mxu0 %v1590
  %v1690 = vpop.f32.mrb[0].mxu0
  %v1691 = vadd.f32 %v1538, %v1690
  %v1692 = vpop.f32.mrb[0].mxu0
  %1693 = vmatprep.mubr.f32.mxu0 0.0
  %1694 = vmatmul.mubr.f32.gmra.mrb[0].mxu0 %v1593
  %v1695 = vpop.f32.mrb[0].mxu0
  %v1696 = vadd.f32 %v1543, %v1695
  %v1697 = vpop.f32.mrb[0].mxu0
  %1698 = vmatprep.mubr.f32.mxu0 0.0
  %1699 = vmatmul.mubr.f32.gmra.mrb[0].mxu0 %v1596
  %v1700 = vpop.f32.mrb[0].mxu0
  %v1701 = vadd.f32 %v1548, %v1700
  %v1702 = vpop.f32.mrb[0].mxu0
  %1703 = vmatprep.mubr.f32.mxu0 0.0
  %1704 = vmatmul.mubr.f32.gmra.mrb[0].mxu0 %v1599
  %v1705 = vpop.f32.mrb[0].mxu0
  %v1706 = vadd.f32 %v1553, %v1705
  %v1707 = vpop.f32.mrb[0].mxu0
  %1708 = vmatprep.mubr.f32.mxu0 0.0
  %1709 = vmatmul.mubr.f32.gmra.mrb[0].mxu0 %v1602
  %v1710 = vpop.f32.mrb[0].mxu0
  %v1711 = vadd.f32 %v1558, %v1710
  %v1712 = vpop.f32.mrb[0].mxu0
  %1713 = vmatprep.mubr.f32.mxu0 0.0
  %1714 = vmatmul.mubr.f32.gmra.mrb[0].mxu0 %v1605
  %v1715 = vpop.f32.mrb[0].mxu0
  %v1716 = vadd.f32 %v1563, %v1715
  %v1717 = vpop.f32.mrb[0].mxu0
  %1718 = vmatprep.mubr.f32.mxu0 0.0
  %1719 = vmatmul.mubr.f32.gmra.mrb[0].mxu0 %v1608
  %v1720 = vpop.f32.mrb[0].mxu0
  %v1721 = vadd.f32 %v1568, %v1720
  %v1722 = vpop.f32.mrb[0].mxu0
  %1723 = vmatprep.mubr.f32.mxu0 0.0
  %1724 = vmatmul.mubr.f32.gmra.mrb[0].mxu0 %v1611
  %v1725 = vpop.f32.mrb[0].mxu0
  %v1726 = vadd.f32 %v1573, %v1725
  %v1727 = vpop.f32.mrb[0].mxu0
  %1728 = vmatprep.mubr.f32.mxu0 0.0
  %1729 = vmatmul.mubr.f32.gmra.mrb[0].mxu0 %v1614
  %v1730 = vpop.f32.mrb[0].mxu0
  %v1731 = vadd.f32 %v1578, %v1730
  %v1732 = vpop.f32.mrb[0].mxu0
  %1733 = vmatprep.mubr.f32.mxu0 0.0
  %1734 = vmatmul.mubr.f32.gmra.mrb[0].mxu0 %v1617
  %v1735 = vpop.f32.mrb[0].mxu0
  %v1736 = vadd.f32 %v1583, %v1735
  %v1737 = vpop.f32.mrb[0].mxu0
  %1738 = vdwg.mxu0
  %v1739 = vld [vmem:[%s10] sm:$0xff]
  %v1740 = vld [vmem:[%s10 + $0x8] sm:$0x3]
  %v1741 = vld [vmem:[%s11] sm:$0xff]
  %v1742 = vld [vmem:[%s11 + $0x8] sm:$0x3]
  %1744 = vset.pattern.permute.xlu0 0
  %1745 = vperm.xlu0 %1744, %v1741
  %v1746 = vpop.permute.xlu0 %1745
  %1749 = vset.pattern.permute.xlu0 0
  %1750 = vperm.xlu0 %1749, %v1742
  %v1751 = vpop.permute.xlu0 %1750
  %vm1753 = vcmask 687104
  %v1755 = vsel %vm1753, %v1739, 0
  %v1758 = vsel %vm1753, %v1740, 0
  %v1761 = vsel %vm336, %v1736, 0
  %1763 = vmatprep.subr.mxu0 0.0
  %1764 = vmatpush1.msra.mxu0 %v1686
  %1765 = vmatprep.subr.mxu0 0.0
  %1766 = vmatpush1.msra.mxu0 %v1691
  %1767 = vmatprep.subr.mxu0 0.0
  %1768 = vmatpush1.msra.mxu0 %v1696
  %1769 = vmatprep.subr.mxu0 0.0
  %1770 = vmatpush1.msra.mxu0 %v1701
  %1771 = vmatprep.subr.mxu0 0.0
  %1772 = vmatpush1.msra.mxu0 %v1706
  %1773 = vmatprep.subr.mxu0 0.0
  %1774 = vmatpush1.msra.mxu0 %v1711
  %1775 = vmatprep.subr.mxu0 0.0
  %1776 = vmatpush1.msra.mxu0 %v1716
  %1777 = vmatprep.subr.mxu0 0.0
  %1778 = vmatpush1.msra.mxu0 %v1721
  %1779 = vmatprep.subr.mxu0 0.0
  %1780 = vmatpush1.msra.mxu0 %v1726
  %1781 = vmatprep.subr.mxu0 0.0
  %1782 = vmatpush1.msra.mxu0 %v1731
  %1783 = vmatprep.subr.mxu0 0.0
  %1784 = vmatpush1.msra.mxu0 %v1761
  %1785 = vmatprep.subr.mxu0 0.0
  %1786 = vmatpush1.msra.mxu0 0.0
  %1787 = vmatprep.subr.mxu0 0.0
  %1788 = vmatpush1.msra.mxu0 0.0
  %1789 = vmatprep.subr.mxu0 0.0
  %1790 = vmatpush1.msra.mxu0 0.0
  %1791 = vmatprep.subr.mxu0 0.0
  %1792 = vmatpush1.msra.mxu0 0.0
  %1793 = vmatprep.subr.mxu0 0.0
  %1794 = vmatpush1.msra.mxu0 0.0
  %1795 = vmatprep.subr.mxu0 0.0
  %1796 = vmatpush1.msra.mxu0 0.0
  %1797 = vmatprep.subr.mxu0 0.0
  %1798 = vmatpush1.msra.mxu0 0.0
  %1799 = vmatprep.subr.mxu0 0.0
  %1800 = vmatpush1.msra.mxu0 0.0
  %1801 = vmatprep.subr.mxu0 0.0
  %1802 = vmatpush1.msra.mxu0 0.0
  %1803 = vmatprep.subr.mxu0 0.0
  %1804 = vmatpush1.msra.mxu0 0.0
  %1805 = vmatprep.subr.mxu0 0.0
  %1806 = vmatpush1.msra.mxu0 0.0
  %1807 = vmatprep.subr.mxu0 0.0
  %1808 = vmatpush1.msra.mxu0 0.0
  %1809 = vmatprep.subr.mxu0 0.0
  %1810 = vmatpush1.msra.mxu0 0.0
  %1811 = vmatprep.subr.mxu0 0.0
  %1812 = vmatpush1.msra.mxu0 0.0
  %1813 = vmatprep.subr.mxu0 0.0
  %1814 = vmatpush1.msra.mxu0 0.0
  %1815 = vmatprep.subr.mxu0 0.0
  %1816 = vmatpush1.msra.mxu0 0.0
  %1817 = vmatprep.subr.mxu0 0.0
  %1818 = vmatpush1.msra.mxu0 0.0
  %1819 = vmatprep.subr.mxu0 0.0
  %1820 = vmatpush1.msra.mxu0 0.0
  %1821 = vmatprep.subr.mxu0 0.0
  %1822 = vmatpush1.msra.mxu0 0.0
  %1823 = vmatprep.subr.mxu0 0.0
  %1824 = vmatpush1.msra.mxu0 0.0
  %1825 = vmatprep.subr.mxu0 0.0
  %1826 = vmatpush1.msra.mxu0 0.0
  %1827 = vmatprep.mubr.f32.mxu0 0.0
  %1828 = vmatmul.mubr.f32.gmra.mrb[0].mxu0 %v1755
  %v1829 = vpop.f32.mrb[0].mxu0
  %v1830 = vadd.f32 %v1746, %v1829
  %v1831 = vpop.f32.mrb[0].mxu0
  %1832 = vmatprep.mubr.f32.mxu0 0.0
  %1833 = vmatmul.mubr.f32.gmra.mrb[0].mxu0 %v1758
  %v1834 = vpop.f32.mrb[0].mxu0
  %v1835 = vadd.f32 %v1751, %v1834
  %v1836 = vpop.f32.mrb[0].mxu0
  %1837 = vdwg.mxu0
  %vm1838 = vcmask 15360
  %1839 = vst.msk [vmem:[%s12] sm:$0xff] %vm1838, %v1830
  %vm1840 = vcmask 9216
  %1841 = vst.msk [vmem:[%s12 + $0x8] sm:$0x3] %vm1840, %v1835
  // Predicated region
  $region50: #{lenet_forward.1} parent=0 // pred_check
    _
  $region51: #{lenet_forward.1} parent=0 // pred_check_branch
    %1843 = sbr.rel (0) target = $region53
  $region52: #{lenet_forward.1} parent=0 // pred_region
    _
  $region53: #{lenet_forward.1} parent=0 // pred_fallthru
    _
  // Predicated region
  $region54: #{lenet_forward.1} parent=0 // pred_check
    _
  $region55: #{lenet_forward.1} parent=0 // pred_check_branch
    %1845 = sbr.rel (0) target = $region57
  $region56: #{lenet_forward.1} parent=0 // pred_region
    _
  $region57: #{lenet_forward.1} parent=0 // pred_fallthru
    _

</llo_original>
